<compile_context>
chip_gen: v7x
topology: tpu7x:2x2x1
jax: 0.10.0
libtpu: 0.0.40
codegen_flags: <defaults>
</compile_context>

<pallas_src>
import functools

import jax
import jax.numpy as jnp
from jax import lax
from jax.experimental import pallas as pl
from jax.experimental.pallas import tpu as pltpu


# --------------------------------------------------------------------------- #
# Fused kernel: per-(batch, q-tile) projections + attention + proj + LayerNorm
# --------------------------------------------------------------------------- #
def _mha_kernel(q_ref, k_ref, v_ref, mask_ref,
                wq_ref, wk_ref, wv_ref, wp_ref, gamma_ref, beta_ref,
                out_ref, attn_ref,
                ks_ref, vs_ref,
                *, n_head, d_k, d_model, eps):
    qi = pl.program_id(1)

    # ---- K/V projections: computed once per batch element, cached in VMEM ----
    # (qi is the inner "arbitrary" grid axis, so the scratch persists across the
    #  q tiles of this batch element; recomputed when the batch index changes.)
    @pl.when(qi == 0)
    def _():
        k = k_ref[0]                                             # [len_k, d_model]
        v = v_ref[0]
        ks_ref[...] = jnp.dot(k, wk_ref[...],
                              preferred_element_type=jnp.float32).astype(ks_ref.dtype)
        vs_ref[...] = jnp.dot(v, wv_ref[...],
                              preferred_element_type=jnp.float32).astype(vs_ref.dtype)

    # ---- Q projection for this q tile (wq already carries the 1/sqrt(d_k)) ----
    q = q_ref[0]                                                 # [tq, d_model]
    qs = jnp.dot(q, wq_ref[...], preferred_element_type=jnp.float32)
    qs = qs.astype(ks_ref.dtype)                                 # MXU compute dtype
    ks = ks_ref[...]
    vs = vs_ref[...]
    mask = mask_ref[0]                                           # [tq, len_k] int8

    neg = jnp.float32(-1e9)
    dnums = (((1,), (1,)), ((), ()))      # contract on d_k: qh @ kh^T without a .T
    ctx_parts = []
    for h in range(n_head):               # static unroll over heads
        sl = slice(h * d_k, (h + 1) * d_k)
        s = lax.dot_general(qs[:, sl], ks[:, sl], dnums,
                            preferred_element_type=jnp.float32)  # [tq, len_k] f32
        s = jnp.where(mask != 0, neg, s)  # exact -1e9 on masked positions
        s = s - jnp.max(s, axis=-1, keepdims=True)
        p = jnp.exp(s)
        attn = p / jnp.sum(p, axis=-1, keepdims=True)            # exact softmax
        attn_ref[h, 0] = attn.astype(attn_ref.dtype)
        ctx_parts.append(jnp.dot(attn.astype(vs.dtype), vs[:, sl],
                                 preferred_element_type=jnp.float32))
    # Head-major, lane-dense context (matches torch.cat(torch.split(...), -1)).
    ctx = jnp.concatenate(ctx_parts, axis=-1)                    # [tq, d_model] f32

    # ---- Fused epilogue: output projection + residual + LayerNormalization ----
    y = jnp.dot(ctx.astype(wp_ref.dtype), wp_ref[...],
                preferred_element_type=jnp.float32)
    z = y + q_ref[0].astype(jnp.float32)                         # residual = q
    mu = jnp.mean(z, axis=-1, keepdims=True)
    zc = z - mu
    # torch.std default: unbiased (ddof = 1); eps added to sigma (not inside sqrt).
    var = jnp.sum(zc * zc, axis=-1, keepdims=True) * jnp.float32(1.0 / (d_model - 1))
    ln = zc / (jnp.sqrt(var) + jnp.float32(eps))
    out_ref[0] = (ln * gamma_ref[...] + beta_ref[...]).astype(out_ref.dtype)


# --------------------------------------------------------------------------- #
# Wrapper
# --------------------------------------------------------------------------- #
def _pick_q_tile(len_q, max_tile=128):
    if len_q <= max_tile:
        return len_q
    for t in range(max_tile, 7, -8):      # largest multiple-of-8 divisor <= max_tile
        if len_q % t == 0:
            return t
    return len_q                          # fallback: single full tile


def multi_head_attention(q, k, v, attn_mask,
                         w_qs, w_ks, w_vs, w_proj, gamma, beta, *,
                         eps=1e-3,
                         compute_dtype=jnp.float32,   # bf16 = fast path on v5e/v6e/v7x
                         attn_dtype=jnp.float32,      # returned attention probs dtype
                         q_tile=128,
                         vmem_limit_bytes=64 * 1024 * 1024):
    n_head, d_model, d_k = w_qs.shape
    bsz, len_q, _ = q.shape
    _, len_k, _ = k.shape
    assert n_head * d_k == d_model, "n_head * d_k must equal d_model"

    # Pack per-head projections into one wide operand: [d_model, n_head*d_k],
    # head-major columns (matches torch's cat(split(...), dim=-1)).  The
    # 1/sqrt(d_k) score scale is folded into the packed q weight once here.
    scale = jnp.float32(1.0 / (d_k ** 0.5))
    wq_f = jnp.transpose(w_qs, (1, 0, 2)).reshape(d_model, d_model) * scale
    wk_f = jnp.transpose(w_ks, (1, 0, 2)).reshape(d_model, d_model)
    wv_f = jnp.transpose(w_vs, (1, 0, 2)).reshape(d_model, d_model)
    wp_t = jnp.transpose(w_proj)                          # torch Linear: y = x @ W^T

    cdt = compute_dtype
    qc, kc, vc = q.astype(cdt), k.astype(cdt), v.astype(cdt)
    wq_f, wk_f, wv_f, wp_t = (w.astype(cdt) for w in (wq_f, wk_f, wv_f, wp_t))

    # Mask travels as int8 (4x fewer HBM bytes than an f32 bias); select in-kernel.
    mask_i8 = (attn_mask != 0).astype(jnp.int8)

    tq = _pick_q_tile(len_q, q_tile)
    n_q_tiles = len_q // tq

    kernel = functools.partial(_mha_kernel, n_head=n_head, d_k=d_k,
                               d_model=d_model, eps=eps)

    out, attns = pl.pallas_call(
        kernel,
        grid=(bsz, n_q_tiles),
        in_specs=[
            pl.BlockSpec((1, tq, d_model), lambda b, qi: (b, qi, 0)),    # q
            pl.BlockSpec((1, len_k, d_model), lambda b, qi: (b, 0, 0)),  # k
            pl.BlockSpec((1, len_k, d_model), lambda b, qi: (b, 0, 0)),  # v
            pl.BlockSpec((1, tq, len_k), lambda b, qi: (b, qi, 0)),      # int8 mask
            pl.BlockSpec((d_model, d_model), lambda b, qi: (0, 0)),      # fused w_qs
            pl.BlockSpec((d_model, d_model), lambda b, qi: (0, 0)),      # fused w_ks
            pl.BlockSpec((d_model, d_model), lambda b, qi: (0, 0)),      # fused w_vs
            pl.BlockSpec((d_model, d_model), lambda b, qi: (0, 0)),      # proj (pre-T)
            pl.BlockSpec((1, d_model), lambda b, qi: (0, 0)),            # gamma
            pl.BlockSpec((1, d_model), lambda b, qi: (0, 0)),            # beta
        ],
        out_specs=[
            pl.BlockSpec((1, tq, d_model), lambda b, qi: (b, qi, 0)),
            pl.BlockSpec((n_head, 1, tq, len_k), lambda b, qi: (0, b, qi, 0)),
        ],
        out_shape=[
            jax.ShapeDtypeStruct((bsz, len_q, d_model), jnp.float32),
            jax.ShapeDtypeStruct((n_head, bsz, len_q, len_k), attn_dtype),
        ],
        scratch_shapes=[
            pltpu.VMEM((len_k, d_model), cdt),   # cached K projection
            pltpu.VMEM((len_k, d_model), cdt),   # cached V projection
        ],
        compiler_params=pltpu.CompilerParams(
            dimension_semantics=("parallel", "arbitrary"),
            vmem_limit_bytes=vmem_limit_bytes),
    )(qc, kc, vc, mask_i8, wq_f, wk_f, wv_f, wp_t, gamma, beta)

    attns = attns.reshape(n_head * bsz, len_q, len_k)
    return out, attns


# --------------------------------------------------------------------------- #
# Pure-JAX reference (mirrors the PyTorch forward, eval mode)
# --------------------------------------------------------------------------- #
def _reference(q, k, v, attn_mask, w_qs, w_ks, w_vs, w_proj, gamma, beta, eps=1e-3):
    n_head, d_model, d_k = w_qs.shape
    bsz, len_q, _ = q.shape
    _, len_k, _ = k.shape

    qs = jnp.einsum('btd,hde->hbte', q, w_qs)          # [h, b, len_q, d_k]
    ks = jnp.einsum('btd,hde->hbte', k, w_ks)
    vs = jnp.einsum('btd,hde->hbte', v, w_vs)
    scores = jnp.einsum('hbqe,hbke->hbqk', qs, ks) / jnp.sqrt(jnp.float32(d_k))
    scores = jnp.where(attn_mask[None] != 0, -1e9, scores)
    attn = jax.nn.softmax(scores, axis=-1)
    ctx = jnp.einsum('hbqk,hbke->hbqe', attn, vs)      # [h, b, len_q, d_k]

    concat = jnp.transpose(ctx, (1, 2, 0, 3)).reshape(bsz * len_q, n_head * d_k)
    y = concat @ w_proj.T + q.reshape(bsz * len_q, d_model)
    mu = jnp.mean(y, axis=-1, keepdims=True)
    sigma = jnp.sqrt(jnp.sum((y - mu) ** 2, axis=-1, keepdims=True) / (d_model - 1))
    ln = (y - mu) / (sigma + eps) * gamma + beta
    return ln.reshape(bsz, len_q, d_model), attn.reshape(n_head * bsz, len_q, len_k)


# --------------------------------------------------------------------------- #
# Main
# --------------------------------------------------------------------------- #
if __name__ == "__main__":
    n_head, d_model = 4, 32
    d_k = d_model // n_head
    bsz, seq = 2, 8

    key = jax.random.PRNGKey(0)
    ks_ = jax.random.split(key, 8)

    # Deterministic "xavier_normal"-style init.
    def xavier(k_, shape, fan_in, fan_out):
        std = (2.0 / (fan_in + fan_out)) ** 0.5
        return std * jax.random.normal(k_, shape, dtype=jnp.float32)

    w_qs = xavier(ks_[0], (n_head, d_model, d_k), d_model * d_k, n_head * d_k)
    w_ks = xavier(ks_[1], (n_head, d_model, d_k), d_model * d_k, n_head * d_k)
    w_vs = xavier(ks_[2], (n_head, d_model, d_k), d_model * d_k, n_head * d_k)
    w_proj = xavier(ks_[3], (d_model, d_model), d_model, d_model)
    gamma = jnp.ones((1, d_model), jnp.float32)   # LayerNormalization a_2
    beta = jnp.zeros((1, d_model), jnp.float32)   # LayerNormalization b_2

    q = jax.random.normal(ks_[4], (bsz, seq, d_model), dtype=jnp.float32)
    k = jax.random.normal(ks_[5], (bsz, seq, d_model), dtype=jnp.float32)
    v = jax.random.normal(ks_[6], (bsz, seq, d_model), dtype=jnp.float32)

    # Causal attention mask: nonzero (masked) where key index > query index.
    causal = jnp.triu(jnp.ones((seq, seq), jnp.int32), k=1)
    attn_mask = jnp.broadcast_to(causal, (bsz, seq, seq)).astype(jnp.int32)

    out_ref, attns_ref = _reference(
        q, k, v, attn_mask, w_qs, w_ks, w_vs, w_proj, gamma, beta)

    # f32 path: strict parity with the PyTorch reference (tolerance only covers
    # MXU default-precision / operation-order differences).
    out, attns = multi_head_attention(
        q, k, v, attn_mask, w_qs, w_ks, w_vs, w_proj, gamma, beta)
    jax.block_until_ready((out, attns))
    assert jnp.allclose(out, out_ref, atol=5e-3, rtol=5e-3), "output mismatch (f32)"
    assert jnp.allclose(attns, attns_ref, atol=5e-3, rtol=5e-3), "attn mismatch (f32)"

    # bf16 fast path (native MXU format on v5e/v6e/v7x): looser tolerance vs the
    # f32 reference, f32 accumulation / softmax / LayerNorm preserved in-kernel.
    out_bf, attns_bf = multi_head_attention(
        q, k, v, attn_mask, w_qs, w_ks, w_vs, w_proj, gamma, beta,
        compute_dtype=jnp.bfloat16, attn_dtype=jnp.bfloat16)
    jax.block_until_ready((out_bf, attns_bf))
    assert jnp.allclose(out_bf, out_ref, atol=1e-1, rtol=5e-2), "output mismatch (bf16)"
    assert jnp.allclose(attns_bf.astype(jnp.float32), attns_ref,
                        atol=5e-2, rtol=5e-2), "attn mismatch (bf16)"

    print("KERNEL_OK")
</pallas_src>

<mosaic_0001>
module attributes {stable_mosaic.version = 11 : i64} {
  func.func @_mha_kernel(%arg0: i32, %arg1: i32, %arg2: memref<1x8x32xf32, #tpu.memory_space<vmem>>, %arg3: memref<1x8x32xf32, #tpu.memory_space<vmem>>, %arg4: memref<1x8x32xf32, #tpu.memory_space<vmem>>, %arg5: memref<1x8x8xi8, #tpu.memory_space<vmem>>, %arg6: memref<32x32xf32, #tpu.memory_space<vmem>>, %arg7: memref<32x32xf32, #tpu.memory_space<vmem>>, %arg8: memref<32x32xf32, #tpu.memory_space<vmem>>, %arg9: memref<32x32xf32, #tpu.memory_space<vmem>>, %arg10: memref<1x32xf32, #tpu.memory_space<vmem>>, %arg11: memref<1x32xf32, #tpu.memory_space<vmem>>, %arg12: memref<1x8x32xf32, #tpu.memory_space<vmem>>, %arg13: memref<4x1x8x8xf32, #tpu.memory_space<vmem>>, %arg14: memref<8x32xf32, #tpu.memory_space<vmem>>, %arg15: memref<8x32xf32, #tpu.memory_space<vmem>>) attributes {dimension_semantics = [#tpu.dimension_semantics<parallel>, #tpu.dimension_semantics<arbitrary>], iteration_bounds = array<i64: 2, 1>, scalar_prefetch = 0 : i64, scratch_operands = 2 : i64, tpu.core_type = #tpu.core_type<tc>, window_params = [{transform_indices = @transform_0, window_bounds = array<i64: 1, 8, 32>}, {transform_indices = @transform_1, window_bounds = array<i64: 1, 8, 32>}, {transform_indices = @transform_2, window_bounds = array<i64: 1, 8, 32>}, {transform_indices = @transform_3, window_bounds = array<i64: 1, 8, 8>}, {pipeline_mode = #tpu.pipeline_mode<synchronous>, transform_indices = @transform_4, window_bounds = array<i64: 32, 32>}, {pipeline_mode = #tpu.pipeline_mode<synchronous>, transform_indices = @transform_5, window_bounds = array<i64: 32, 32>}, {pipeline_mode = #tpu.pipeline_mode<synchronous>, transform_indices = @transform_6, window_bounds = array<i64: 32, 32>}, {pipeline_mode = #tpu.pipeline_mode<synchronous>, transform_indices = @transform_7, window_bounds = array<i64: 32, 32>}, {pipeline_mode = #tpu.pipeline_mode<synchronous>, transform_indices = @transform_8, window_bounds = array<i64: 1, 32>}, {pipeline_mode = #tpu.pipeline_mode<synchronous>, transform_indices = @transform_9, window_bounds = array<i64: 1, 32>}, {transform_indices = @transform_10, window_bounds = array<i64: 1, 8, 32>}, {transform_indices = @transform_11, window_bounds = array<i64: 4, 1, 8, 8>}]} {
    %c0_i32 = arith.constant 0 : i32
    %0 = arith.cmpi eq, %arg1, %c0_i32 : i32
    %1 = arith.extui %0 : i1 to i32
    %c0_i32_0 = arith.constant 0 : i32
    %2 = arith.cmpi ne, %1, %c0_i32_0 : i32
    scf.if %2 {
      %c0_66 = arith.constant 0 : index
      %c0_67 = arith.constant 0 : index
      %c0_68 = arith.constant 0 : index
      %126 = vector.load %arg3[%c0_66, %c0_67, %c0_68] : memref<1x8x32xf32, #tpu.memory_space<vmem>>, vector<1x8x32xf32>
      %127 = vector.shape_cast %126 : vector<1x8x32xf32> to vector<8x32xf32>
      %c0_69 = arith.constant 0 : index
      %c0_70 = arith.constant 0 : index
      %c0_71 = arith.constant 0 : index
      %128 = vector.load %arg4[%c0_69, %c0_70, %c0_71] : memref<1x8x32xf32, #tpu.memory_space<vmem>>, vector<1x8x32xf32>
      %129 = vector.shape_cast %128 : vector<1x8x32xf32> to vector<8x32xf32>
      %c0_72 = arith.constant 0 : index
      %c0_73 = arith.constant 0 : index
      %130 = vector.load %arg7[%c0_72, %c0_73] : memref<32x32xf32, #tpu.memory_space<vmem>>, vector<32x32xf32>
      %cst_74 = arith.constant dense<0.000000e+00> : vector<8x32xf32>
      %131 = tpu.matmul %127, %130, %cst_74 {dimension_numbers = #tpu.dot_dimension_numbers<[1], [0], [0], [1], [0, 0, 1, 1], [], []>} : vector<8x32xf32>, vector<32x32xf32>, vector<8x32xf32> -> vector<8x32xf32>
      %c0_75 = arith.constant 0 : index
      %c0_76 = arith.constant 0 : index
      %132 = vector.load %arg14[%c0_75, %c0_76] : memref<8x32xf32, #tpu.memory_space<vmem>>, vector<8x32xf32>
      tpu.vector_store %arg14[%c0_75, %c0_76], %131 {strides = array<i32>} : memref<8x32xf32, #tpu.memory_space<vmem>>, vector<8x32xf32>,
      %c0_77 = arith.constant 0 : index
      %c0_78 = arith.constant 0 : index
      %133 = vector.load %arg8[%c0_77, %c0_78] : memref<32x32xf32, #tpu.memory_space<vmem>>, vector<32x32xf32>
      %cst_79 = arith.constant dense<0.000000e+00> : vector<8x32xf32>
      %134 = tpu.matmul %129, %133, %cst_79 {dimension_numbers = #tpu.dot_dimension_numbers<[1], [0], [0], [1], [0, 0, 1, 1], [], []>} : vector<8x32xf32>, vector<32x32xf32>, vector<8x32xf32> -> vector<8x32xf32>
      %c0_80 = arith.constant 0 : index
      %c0_81 = arith.constant 0 : index
      %135 = vector.load %arg15[%c0_80, %c0_81] : memref<8x32xf32, #tpu.memory_space<vmem>>, vector<8x32xf32>
      tpu.vector_store %arg15[%c0_80, %c0_81], %134 {strides = array<i32>} : memref<8x32xf32, #tpu.memory_space<vmem>>, vector<8x32xf32>,
    } else {
    }
    %c0 = arith.constant 0 : index
    %c0_1 = arith.constant 0 : index
    %c0_2 = arith.constant 0 : index
    %3 = vector.load %arg2[%c0, %c0_1, %c0_2] : memref<1x8x32xf32, #tpu.memory_space<vmem>>, vector<1x8x32xf32>
    %4 = vector.shape_cast %3 : vector<1x8x32xf32> to vector<8x32xf32>
    %c0_3 = arith.constant 0 : index
    %c0_4 = arith.constant 0 : index
    %5 = vector.load %arg6[%c0_3, %c0_4] : memref<32x32xf32, #tpu.memory_space<vmem>>, vector<32x32xf32>
    %cst = arith.constant dense<0.000000e+00> : vector<8x32xf32>
    %6 = tpu.matmul %4, %5, %cst {dimension_numbers = #tpu.dot_dimension_numbers<[1], [0], [0], [1], [0, 0, 1, 1], [], []>} : vector<8x32xf32>, vector<32x32xf32>, vector<8x32xf32> -> vector<8x32xf32>
    %c0_5 = arith.constant 0 : index
    %c0_6 = arith.constant 0 : index
    %7 = vector.load %arg14[%c0_5, %c0_6] : memref<8x32xf32, #tpu.memory_space<vmem>>, vector<8x32xf32>
    %c0_7 = arith.constant 0 : index
    %c0_8 = arith.constant 0 : index
    %8 = vector.load %arg15[%c0_7, %c0_8] : memref<8x32xf32, #tpu.memory_space<vmem>>, vector<8x32xf32>
    %c0_9 = arith.constant 0 : index
    %c0_10 = arith.constant 0 : index
    %c0_11 = arith.constant 0 : index
    %9 = vector.load %arg5[%c0_9, %c0_10, %c0_11] : memref<1x8x8xi8, #tpu.memory_space<vmem>>, vector<1x8x8xi8>
    %10 = vector.shape_cast %9 : vector<1x8x8xi8> to vector<8x8xi8>
    %11 = vector.extract_strided_slice %6 {offsets = [0, 0], sizes = [8, 8], strides = [1, 1]} : vector<8x32xf32> to vector<8x8xf32>
    %12 = vector.extract_strided_slice %7 {offsets = [0, 0], sizes = [8, 8], strides = [1, 1]} : vector<8x32xf32> to vector<8x8xf32>
    %cst_12 = arith.constant dense<0.000000e+00> : vector<8x8xf32>
    %13 = tpu.matmul %11, %12, %cst_12 {dimension_numbers = #tpu.dot_dimension_numbers<[1], [1], [0], [0], [0, 0, 1, 0], [], []>} : vector<8x8xf32>, vector<8x8xf32>, vector<8x8xf32> -> vector<8x8xf32>
    %c0_i8 = arith.constant 0 : i8
    %14 = vector.broadcast %c0_i8 : i8 to vector<8x8xi8>
    %15 = arith.cmpi ne, %10, %14 : vector<8x8xi8>
    %cst_13 = arith.constant -1.000000e+09 : f32
    %16 = vector.broadcast %cst_13 : f32 to vector<8x8xf32>
    %17 = arith.select %15, %16, %13 : vector<8x8xi1>, vector<8x8xf32>
    %cst_14 = arith.constant dense<0xFF800000> : vector<8xf32>
    %18 = vector.multi_reduction <maximumf>, %17, %cst_14 [1] : vector<8x8xf32> to vector<8xf32>
    %19 = vector.shape_cast %18 : vector<8xf32> to vector<8x1xf32>
    %20 = vector.broadcast %19 : vector<8x1xf32> to vector<8x8xf32>
    %21 = arith.subf %17, %20 : vector<8x8xf32>
    %22 = math.exp %21 : vector<8x8xf32>
    %cst_15 = arith.constant dense<0.000000e+00> : vector<8xf32>
    %23 = vector.multi_reduction <add>, %22, %cst_15 [1] : vector<8x8xf32> to vector<8xf32>
    %24 = vector.shape_cast %23 : vector<8xf32> to vector<8x1xf32>
    %25 = vector.broadcast %24 : vector<8x1xf32> to vector<8x8xf32>
    %26 = arith.divf %22, %25 : vector<8x8xf32>
    %c0_16 = arith.constant 0 : index
    %c0_17 = arith.constant 0 : index
    %c0_18 = arith.constant 0 : index
    %c0_19 = arith.constant 0 : index
    %27 = vector.load %arg13[%c0_16, %c0_17, %c0_18, %c0_19] : memref<4x1x8x8xf32, #tpu.memory_space<vmem>>, vector<1x1x8x8xf32>
    %28 = vector.shape_cast %27 : vector<1x1x8x8xf32> to vector<8x8xf32>
    %29 = vector.shape_cast %26 : vector<8x8xf32> to vector<1x1x8x8xf32>
    tpu.vector_store %arg13[%c0_16, %c0_17, %c0_18, %c0_19], %29 {strides = array<i32>} : memref<4x1x8x8xf32, #tpu.memory_space<vmem>>, vector<1x1x8x8xf32>,
    %30 = vector.extract_strided_slice %8 {offsets = [0, 0], sizes = [8, 8], strides = [1, 1]} : vector<8x32xf32> to vector<8x8xf32>
    %cst_20 = arith.constant dense<0.000000e+00> : vector<8x8xf32>
    %31 = tpu.matmul %26, %30, %cst_20 {dimension_numbers = #tpu.dot_dimension_numbers<[1], [0], [0], [1], [0, 0, 1, 1], [], []>} : vector<8x8xf32>, vector<8x8xf32>, vector<8x8xf32> -> vector<8x8xf32>
    %32 = vector.extract_strided_slice %6 {offsets = [0, 8], sizes = [8, 8], strides = [1, 1]} : vector<8x32xf32> to vector<8x8xf32>
    %33 = vector.extract_strided_slice %7 {offsets = [0, 8], sizes = [8, 8], strides = [1, 1]} : vector<8x32xf32> to vector<8x8xf32>
    %cst_21 = arith.constant dense<0.000000e+00> : vector<8x8xf32>
    %34 = tpu.matmul %32, %33, %cst_21 {dimension_numbers = #tpu.dot_dimension_numbers<[1], [1], [0], [0], [0, 0, 1, 0], [], []>} : vector<8x8xf32>, vector<8x8xf32>, vector<8x8xf32> -> vector<8x8xf32>
    %c0_i8_22 = arith.constant 0 : i8
    %35 = vector.broadcast %c0_i8_22 : i8 to vector<8x8xi8>
    %36 = arith.cmpi ne, %10, %35 : vector<8x8xi8>
    %cst_23 = arith.constant -1.000000e+09 : f32
    %37 = vector.broadcast %cst_23 : f32 to vector<8x8xf32>
    %38 = arith.select %36, %37, %34 : vector<8x8xi1>, vector<8x8xf32>
    %cst_24 = arith.constant dense<0xFF800000> : vector<8xf32>
    %39 = vector.multi_reduction <maximumf>, %38, %cst_24 [1] : vector<8x8xf32> to vector<8xf32>
    %40 = vector.shape_cast %39 : vector<8xf32> to vector<8x1xf32>
    %41 = vector.broadcast %40 : vector<8x1xf32> to vector<8x8xf32>
    %42 = arith.subf %38, %41 : vector<8x8xf32>
    %43 = math.exp %42 : vector<8x8xf32>
    %cst_25 = arith.constant dense<0.000000e+00> : vector<8xf32>
    %44 = vector.multi_reduction <add>, %43, %cst_25 [1] : vector<8x8xf32> to vector<8xf32>
    %45 = vector.shape_cast %44 : vector<8xf32> to vector<8x1xf32>
    %46 = vector.broadcast %45 : vector<8x1xf32> to vector<8x8xf32>
    %47 = arith.divf %43, %46 : vector<8x8xf32>
    %c1 = arith.constant 1 : index
    %c0_26 = arith.constant 0 : index
    %c0_27 = arith.constant 0 : index
    %c0_28 = arith.constant 0 : index
    %48 = vector.load %arg13[%c1, %c0_26, %c0_27, %c0_28] : memref<4x1x8x8xf32, #tpu.memory_space<vmem>>, vector<1x1x8x8xf32>
    %49 = vector.shape_cast %48 : vector<1x1x8x8xf32> to vector<8x8xf32>
    %50 = vector.shape_cast %47 : vector<8x8xf32> to vector<1x1x8x8xf32>
    tpu.vector_store %arg13[%c1, %c0_26, %c0_27, %c0_28], %50 {strides = array<i32>} : memref<4x1x8x8xf32, #tpu.memory_space<vmem>>, vector<1x1x8x8xf32>,
    %51 = vector.extract_strided_slice %8 {offsets = [0, 8], sizes = [8, 8], strides = [1, 1]} : vector<8x32xf32> to vector<8x8xf32>
    %cst_29 = arith.constant dense<0.000000e+00> : vector<8x8xf32>
    %52 = tpu.matmul %47, %51, %cst_29 {dimension_numbers = #tpu.dot_dimension_numbers<[1], [0], [0], [1], [0, 0, 1, 1], [], []>} : vector<8x8xf32>, vector<8x8xf32>, vector<8x8xf32> -> vector<8x8xf32>
    %53 = vector.extract_strided_slice %6 {offsets = [0, 16], sizes = [8, 8], strides = [1, 1]} : vector<8x32xf32> to vector<8x8xf32>
    %54 = vector.extract_strided_slice %7 {offsets = [0, 16], sizes = [8, 8], strides = [1, 1]} : vector<8x32xf32> to vector<8x8xf32>
    %cst_30 = arith.constant dense<0.000000e+00> : vector<8x8xf32>
    %55 = tpu.matmul %53, %54, %cst_30 {dimension_numbers = #tpu.dot_dimension_numbers<[1], [1], [0], [0], [0, 0, 1, 0], [], []>} : vector<8x8xf32>, vector<8x8xf32>, vector<8x8xf32> -> vector<8x8xf32>
    %c0_i8_31 = arith.constant 0 : i8
    %56 = vector.broadcast %c0_i8_31 : i8 to vector<8x8xi8>
    %57 = arith.cmpi ne, %10, %56 : vector<8x8xi8>
    %cst_32 = arith.constant -1.000000e+09 : f32
    %58 = vector.broadcast %cst_32 : f32 to vector<8x8xf32>
    %59 = arith.select %57, %58, %55 : vector<8x8xi1>, vector<8x8xf32>
    %cst_33 = arith.constant dense<0xFF800000> : vector<8xf32>
    %60 = vector.multi_reduction <maximumf>, %59, %cst_33 [1] : vector<8x8xf32> to vector<8xf32>
    %61 = vector.shape_cast %60 : vector<8xf32> to vector<8x1xf32>
    %62 = vector.broadcast %61 : vector<8x1xf32> to vector<8x8xf32>
    %63 = arith.subf %59, %62 : vector<8x8xf32>
    %64 = math.exp %63 : vector<8x8xf32>
    %cst_34 = arith.constant dense<0.000000e+00> : vector<8xf32>
    %65 = vector.multi_reduction <add>, %64, %cst_34 [1] : vector<8x8xf32> to vector<8xf32>
    %66 = vector.shape_cast %65 : vector<8xf32> to vector<8x1xf32>
    %67 = vector.broadcast %66 : vector<8x1xf32> to vector<8x8xf32>
    %68 = arith.divf %64, %67 : vector<8x8xf32>
    %c2 = arith.constant 2 : index
    %c0_35 = arith.constant 0 : index
    %c0_36 = arith.constant 0 : index
    %c0_37 = arith.constant 0 : index
    %69 = vector.load %arg13[%c2, %c0_35, %c0_36, %c0_37] : memref<4x1x8x8xf32, #tpu.memory_space<vmem>>, vector<1x1x8x8xf32>
    %70 = vector.shape_cast %69 : vector<1x1x8x8xf32> to vector<8x8xf32>
    %71 = vector.shape_cast %68 : vector<8x8xf32> to vector<1x1x8x8xf32>
    tpu.vector_store %arg13[%c2, %c0_35, %c0_36, %c0_37], %71 {strides = array<i32>} : memref<4x1x8x8xf32, #tpu.memory_space<vmem>>, vector<1x1x8x8xf32>,
    %72 = vector.extract_strided_slice %8 {offsets = [0, 16], sizes = [8, 8], strides = [1, 1]} : vector<8x32xf32> to vector<8x8xf32>
    %cst_38 = arith.constant dense<0.000000e+00> : vector<8x8xf32>
    %73 = tpu.matmul %68, %72, %cst_38 {dimension_numbers = #tpu.dot_dimension_numbers<[1], [0], [0], [1], [0, 0, 1, 1], [], []>} : vector<8x8xf32>, vector<8x8xf32>, vector<8x8xf32> -> vector<8x8xf32>
    %74 = vector.extract_strided_slice %6 {offsets = [0, 24], sizes = [8, 8], strides = [1, 1]} : vector<8x32xf32> to vector<8x8xf32>
    %75 = vector.extract_strided_slice %7 {offsets = [0, 24], sizes = [8, 8], strides = [1, 1]} : vector<8x32xf32> to vector<8x8xf32>
    %cst_39 = arith.constant dense<0.000000e+00> : vector<8x8xf32>
    %76 = tpu.matmul %74, %75, %cst_39 {dimension_numbers = #tpu.dot_dimension_numbers<[1], [1], [0], [0], [0, 0, 1, 0], [], []>} : vector<8x8xf32>, vector<8x8xf32>, vector<8x8xf32> -> vector<8x8xf32>
    %c0_i8_40 = arith.constant 0 : i8
    %77 = vector.broadcast %c0_i8_40 : i8 to vector<8x8xi8>
    %78 = arith.cmpi ne, %10, %77 : vector<8x8xi8>
    %cst_41 = arith.constant -1.000000e+09 : f32
    %79 = vector.broadcast %cst_41 : f32 to vector<8x8xf32>
    %80 = arith.select %78, %79, %76 : vector<8x8xi1>, vector<8x8xf32>
    %cst_42 = arith.constant dense<0xFF800000> : vector<8xf32>
    %81 = vector.multi_reduction <maximumf>, %80, %cst_42 [1] : vector<8x8xf32> to vector<8xf32>
    %82 = vector.shape_cast %81 : vector<8xf32> to vector<8x1xf32>
    %83 = vector.broadcast %82 : vector<8x1xf32> to vector<8x8xf32>
    %84 = arith.subf %80, %83 : vector<8x8xf32>
    %85 = math.exp %84 : vector<8x8xf32>
    %cst_43 = arith.constant dense<0.000000e+00> : vector<8xf32>
    %86 = vector.multi_reduction <add>, %85, %cst_43 [1] : vector<8x8xf32> to vector<8xf32>
    %87 = vector.shape_cast %86 : vector<8xf32> to vector<8x1xf32>
    %88 = vector.broadcast %87 : vector<8x1xf32> to vector<8x8xf32>
    %89 = arith.divf %85, %88 : vector<8x8xf32>
    %c3 = arith.constant 3 : index
    %c0_44 = arith.constant 0 : index
    %c0_45 = arith.constant 0 : index
    %c0_46 = arith.constant 0 : index
    %90 = vector.load %arg13[%c3, %c0_44, %c0_45, %c0_46] : memref<4x1x8x8xf32, #tpu.memory_space<vmem>>, vector<1x1x8x8xf32>
    %91 = vector.shape_cast %90 : vector<1x1x8x8xf32> to vector<8x8xf32>
    %92 = vector.shape_cast %89 : vector<8x8xf32> to vector<1x1x8x8xf32>
    tpu.vector_store %arg13[%c3, %c0_44, %c0_45, %c0_46], %92 {strides = array<i32>} : memref<4x1x8x8xf32, #tpu.memory_space<vmem>>, vector<1x1x8x8xf32>,
    %93 = vector.extract_strided_slice %8 {offsets = [0, 24], sizes = [8, 8], strides = [1, 1]} : vector<8x32xf32> to vector<8x8xf32>
    %cst_47 = arith.constant dense<0.000000e+00> : vector<8x8xf32>
    %94 = tpu.matmul %89, %93, %cst_47 {dimension_numbers = #tpu.dot_dimension_numbers<[1], [0], [0], [1], [0, 0, 1, 1], [], []>} : vector<8x8xf32>, vector<8x8xf32>, vector<8x8xf32> -> vector<8x8xf32>
    %95 = tpu.concatenate %31, %52, %73, %94 in 1 : vector<8x8xf32>, vector<8x8xf32>, vector<8x8xf32>, vector<8x8xf32> -> vector<8x32xf32>
    %c0_48 = arith.constant 0 : index
    %c0_49 = arith.constant 0 : index
    %96 = vector.load %arg9[%c0_48, %c0_49] : memref<32x32xf32, #tpu.memory_space<vmem>>, vector<32x32xf32>
    %cst_50 = arith.constant dense<0.000000e+00> : vector<8x32xf32>
    %97 = tpu.matmul %95, %96, %cst_50 {dimension_numbers = #tpu.dot_dimension_numbers<[1], [0], [0], [1], [0, 0, 1, 1], [], []>} : vector<8x32xf32>, vector<32x32xf32>, vector<8x32xf32> -> vector<8x32xf32>
    %c0_51 = arith.constant 0 : index
    %c0_52 = arith.constant 0 : index
    %c0_53 = arith.constant 0 : index
    %98 = vector.load %arg2[%c0_51, %c0_52, %c0_53] : memref<1x8x32xf32, #tpu.memory_space<vmem>>, vector<1x8x32xf32>
    %99 = vector.shape_cast %98 : vector<1x8x32xf32> to vector<8x32xf32>
    %100 = arith.addf %97, %99 : vector<8x32xf32>
    %cst_54 = arith.constant dense<0.000000e+00> : vector<8xf32>
    %101 = vector.multi_reduction <add>, %100, %cst_54 [1] : vector<8x32xf32> to vector<8xf32>
    %102 = vector.shape_cast %101 : vector<8xf32> to vector<8x1xf32>
    %cst_55 = arith.constant 3.200000e+01 : f32
    %103 = vector.broadcast %cst_55 : f32 to vector<8x1xf32>
    %104 = arith.divf %102, %103 : vector<8x1xf32>
    %105 = vector.broadcast %104 : vector<8x1xf32> to vector<8x32xf32>
    %106 = arith.subf %100, %105 : vector<8x32xf32>
    %107 = arith.mulf %106, %106 : vector<8x32xf32>
    %cst_56 = arith.constant dense<0.000000e+00> : vector<8xf32>
    %108 = vector.multi_reduction <add>, %107, %cst_56 [1] : vector<8x32xf32> to vector<8xf32>
    %109 = vector.shape_cast %108 : vector<8xf32> to vector<8x1xf32>
    %cst_57 = arith.constant 0.0322580636 : f32
    %110 = vector.broadcast %cst_57 : f32 to vector<8x1xf32>
    %111 = arith.mulf %109, %110 : vector<8x1xf32>
    %112 = math.sqrt %111 : vector<8x1xf32>
    %cst_58 = arith.constant 1.000000e-03 : f32
    %113 = vector.broadcast %cst_58 : f32 to vector<8x1xf32>
    %114 = arith.addf %112, %113 : vector<8x1xf32>
    %115 = vector.broadcast %114 : vector<8x1xf32> to vector<8x32xf32>
    %116 = arith.divf %106, %115 : vector<8x32xf32>
    %c0_59 = arith.constant 0 : index
    %c0_60 = arith.constant 0 : index
    %117 = vector.load %arg10[%c0_59, %c0_60] : memref<1x32xf32, #tpu.memory_space<vmem>>, vector<1x32xf32>
    %118 = vector.broadcast %117 : vector<1x32xf32> to vector<8x32xf32>
    %119 = arith.mulf %116, %118 : vector<8x32xf32>
    %c0_61 = arith.constant 0 : index
    %c0_62 = arith.constant 0 : index
    %120 = vector.load %arg11[%c0_61, %c0_62] : memref<1x32xf32, #tpu.memory_space<vmem>>, vector<1x32xf32>
    %121 = vector.broadcast %120 : vector<1x32xf32> to vector<8x32xf32>
    %122 = arith.addf %119, %121 : vector<8x32xf32>
    %c0_63 = arith.constant 0 : index
    %c0_64 = arith.constant 0 : index
    %c0_65 = arith.constant 0 : index
    %123 = vector.load %arg12[%c0_63, %c0_64, %c0_65] : memref<1x8x32xf32, #tpu.memory_space<vmem>>, vector<1x8x32xf32>
    %124 = vector.shape_cast %123 : vector<1x8x32xf32> to vector<8x32xf32>
    %125 = vector.shape_cast %122 : vector<8x32xf32> to vector<1x8x32xf32>
    tpu.vector_store %arg12[%c0_63, %c0_64, %c0_65], %125 {strides = array<i32>} : memref<1x8x32xf32, #tpu.memory_space<vmem>>, vector<1x8x32xf32>,
    return
  }
  func.func @transform_0(%arg0: i32, %arg1: i32) -> (i32, i32, i32) {
    %c0_i32 = arith.constant 0 : i32
    %c0_i32_0 = arith.constant 0 : i32
    return %arg0, %arg1, %c0_i32 : i32, i32, i32
  }
  func.func @transform_1(%arg0: i32, %arg1: i32) -> (i32, i32, i32) {
    %c0_i32 = arith.constant 0 : i32
    %c0_i32_0 = arith.constant 0 : i32
    %c0_i32_1 = arith.constant 0 : i32
    return %arg0, %c0_i32, %c0_i32_0 : i32, i32, i32
  }
  func.func @transform_2(%arg0: i32, %arg1: i32) -> (i32, i32, i32) {
    %c0_i32 = arith.constant 0 : i32
    %c0_i32_0 = arith.constant 0 : i32
    %c0_i32_1 = arith.constant 0 : i32
    return %arg0, %c0_i32, %c0_i32_0 : i32, i32, i32
  }
  func.func @transform_3(%arg0: i32, %arg1: i32) -> (i32, i32, i32) {
    %c0_i32 = arith.constant 0 : i32
    %c0_i32_0 = arith.constant 0 : i32
    return %arg0, %arg1, %c0_i32 : i32, i32, i32
  }
  func.func @transform_4(%arg0: i32, %arg1: i32) -> (i32, i32) {
    %c0_i32 = arith.constant 0 : i32
    %c0_i32_0 = arith.constant 0 : i32
    %c0_i32_1 = arith.constant 0 : i32
    return %c0_i32, %c0_i32_0 : i32, i32
  }
  func.func @transform_5(%arg0: i32, %arg1: i32) -> (i32, i32) {
    %c0_i32 = arith.constant 0 : i32
    %c0_i32_0 = arith.constant 0 : i32
    %c0_i32_1 = arith.constant 0 : i32
    return %c0_i32, %c0_i32_0 : i32, i32
  }
  func.func @transform_6(%arg0: i32, %arg1: i32) -> (i32, i32) {
    %c0_i32 = arith.constant 0 : i32
    %c0_i32_0 = arith.constant 0 : i32
    %c0_i32_1 = arith.constant 0 : i32
    return %c0_i32, %c0_i32_0 : i32, i32
  }
  func.func @transform_7(%arg0: i32, %arg1: i32) -> (i32, i32) {
    %c0_i32 = arith.constant 0 : i32
    %c0_i32_0 = arith.constant 0 : i32
    %c0_i32_1 = arith.constant 0 : i32
    return %c0_i32, %c0_i32_0 : i32, i32
  }
  func.func @transform_8(%arg0: i32, %arg1: i32) -> (i32, i32) {
    %c0_i32 = arith.constant 0 : i32
    %c0_i32_0 = arith.constant 0 : i32
    %c0_i32_1 = arith.constant 0 : i32
    return %c0_i32, %c0_i32_0 : i32, i32
  }
  func.func @transform_9(%arg0: i32, %arg1: i32) -> (i32, i32) {
    %c0_i32 = arith.constant 0 : i32
    %c0_i32_0 = arith.constant 0 : i32
    %c0_i32_1 = arith.constant 0 : i32
    return %c0_i32, %c0_i32_0 : i32, i32
  }
  func.func @transform_10(%arg0: i32, %arg1: i32) -> (i32, i32, i32) {
    %c0_i32 = arith.constant 0 : i32
    %c0_i32_0 = arith.constant 0 : i32
    return %arg0, %arg1, %c0_i32 : i32, i32, i32
  }
  func.func @transform_11(%arg0: i32, %arg1: i32) -> (i32, i32, i32, i32) {
    %c0_i32 = arith.constant 0 : i32
    %c0_i32_0 = arith.constant 0 : i32
    %c0_i32_1 = arith.constant 0 : i32
    return %c0_i32, %arg0, %arg1, %c0_i32_0 : i32, i32, i32, i32
  }
}

</mosaic_0001>

<llo_original>
// kernel: tpu_custom_call.1
$region0: #{tpu_custom_call.1}
  #allocation0 [shape = 'u32[]', space=smem, size = 0x4, offset = 0x4, fixed_abs, tag = 'smem constant byte address 0x4 - core index']
  #allocation1 [shape = 'u32[144,128]{1,0:T(1,128)}', space=vmem, size = 0x12000, scoped, tag = 'internal scratch']
  #allocation2 [shape = 'f32[8,32]{1,0:T(8,128)}', space=vmem, size = 0x1000, scoped, tag = 'scratch operand']
  #allocation3 [shape = 'f32[8,32]{1,0:T(8,128)}', space=vmem, size = 0x1000, scoped, tag = 'scratch operand']
  %s0 = inlined_call_operand.hbm [shape: f32[2,8,32], index: 0, kind: input, shape index: {}]
  %s1 = inlined_call_operand.hbm [shape: f32[2,8,32], index: 1, kind: input, shape index: {}]
  %s2 = inlined_call_operand.hbm [shape: f32[2,8,32], index: 2, kind: input, shape index: {}]
  %s3 = inlined_call_operand.hbm [shape: s8[2,8,8], index: 3, kind: input, shape index: {}]
  %s4 = inlined_call_operand.hbm [shape: f32[32,32], index: 4, kind: input, shape index: {}]
  %s5 = inlined_call_operand.hbm [shape: f32[32,32], index: 5, kind: input, shape index: {}]
  %s6 = inlined_call_operand.hbm [shape: f32[32,32], index: 6, kind: input, shape index: {}]
  %s7 = inlined_call_operand.hbm [shape: f32[32,32], index: 7, kind: input, shape index: {}]
  %s8 = inlined_call_operand.hbm [shape: f32[1,32], index: 8, kind: input, shape index: {}]
  %s9 = inlined_call_operand.hbm [shape: f32[1,32], index: 9, kind: input, shape index: {}]
  %s10 = inlined_call_operand.hbm [shape: f32[2,8,32], index: 10, kind: output, shape index: {0}]
  %s11 = inlined_call_operand.hbm [shape: f32[4,2,8,8], index: 11, kind: output, shape index: {1}]
  %12 = xla_tuple %s10, %s11
  %s13 = sld [smem:[#allocation0]]
  $region125: #{tpu_custom_call.1} parent=0
    _
  %s15 = ssub.s32 1, %s13
  %s16 = scalar_select 0, %s15, %s13
  $region1: #{tpu_custom_call.1} parent=0
    #allocation4 [shape = 'u8[8192]{0}', space=vmem, size = 0x2000, scoped, tag = 'input window, operand 0']
    #allocation5 [shape = 's32[2]{0}', space=sflag, size = 0x8, scoped, tag = 'scoped memory for tpu_custom_call.1']
    #allocation6 [shape = 's32[2]{0}', space=sflag, size = 0x8, scoped, tag = 'scoped memory for tpu_custom_call.1']
    #allocation7 [shape = 'u8[8192]{0}', space=vmem, size = 0x2000, scoped, tag = 'input window, operand 1']
    #allocation8 [shape = 's32[2]{0}', space=sflag, size = 0x8, scoped, tag = 'scoped memory for tpu_custom_call.1']
    #allocation9 [shape = 'u8[8192]{0}', space=vmem, size = 0x2000, scoped, tag = 'input window, operand 2']
    #allocation10 [shape = 'u8[2048]{0}', space=vmem, size = 0x800, scoped, tag = 'input window, operand 3']
    #allocation11 [shape = 's32[2]{0}', space=sflag, size = 0x8, scoped, tag = 'scoped memory for tpu_custom_call.1']
    #allocation12 [shape = 'u8[16384]{0}', space=vmem, size = 0x4000, scoped, tag = 'input window, operand 4, single buffered']
    #allocation13 [shape = 'u8[16384]{0}', space=vmem, size = 0x4000, scoped, tag = 'input window, operand 5, single buffered']
    #allocation14 [shape = 's32[1]{0}', space=sflag, size = 0x4, scoped, tag = 'scoped memory for tpu_custom_call.1']
    #allocation15 [shape = 'u8[16384]{0}', space=vmem, size = 0x4000, scoped, tag = 'input window, operand 6, single buffered']
    #allocation16 [shape = 'u8[16384]{0}', space=vmem, size = 0x4000, scoped, tag = 'input window, operand 7, single buffered']
    #allocation17 [shape = 's32[1]{0}', space=sflag, size = 0x4, scoped, tag = 'scoped memory for tpu_custom_call.1']
    #allocation18 [shape = 'u8[512]{0}', space=vmem, size = 0x400, scoped, tag = 'input window, operand 8, single buffered']
    #allocation19 [shape = 'u8[512]{0}', space=vmem, size = 0x400, scoped, tag = 'input window, operand 9, single buffered']
    #allocation20 [shape = 's32[1]{0}', space=sflag, size = 0x4, scoped, tag = 'scoped memory for tpu_custom_call.1']
    #allocation21 [shape = 'u8[8192]{0}', space=vmem, size = 0x2000, scoped, tag = 'output window, operand 0']
    #allocation22 [shape = 'u8[32768]{0}', space=vmem, size = 0x8000, scoped, tag = 'output window, operand 1']
    #allocation23 [shape = 's32[2]{0}', space=sflag, size = 0x8, scoped, tag = 'scoped memory for tpu_custom_call.1']
    %17 = vsyncpa [#allocation5], 0
    %s18 = scalar_lea.sflag [#allocation5], 1
    %19 = vsyncpa %s18, 0
    %20 = vsyncpa [#allocation8], 0
    %s21 = scalar_lea.sflag [#allocation8], 1
    %22 = vsyncpa %s21, 0
    %23 = vsyncpa [#allocation11], 0
    %s24 = scalar_lea.sflag [#allocation11], 1
    %25 = vsyncpa %s24, 0
    %26 = vsyncpa [#allocation14], 0
    %27 = vsyncpa [#allocation17], 0
    %28 = vsyncpa [#allocation20], 0
    %29 = vsyncpa [#allocation6], 0
    %s30 = scalar_lea.sflag [#allocation6], 1
    %31 = vsyncpa %s30, 0
    %32 = vsyncpa [#allocation23], 0
    %s33 = scalar_lea.sflag [#allocation23], 1
    %34 = vsyncpa %s33, 0
    loop: start=0, step=1, limit=4
    $region2: #{tpu_custom_call.1} parent=1 // loop_pre_header
      _
    $region3: #{tpu_custom_call.1} parent=1 // loop_header
      %s36 = sphi 0, %s40
      %p37 = scmp.ge.s32.totalorder %s36, 4
      %s43 = sphi 0, %s55
      %s44 = sphi 0, %s51
      %s45 = sphi 0, %s43
      %s46 = sphi 0, %s44
      %s47 = sphi 0, %s45
      %s48 = sphi 0, %s46
      %s60 = sphi 0, %s62
      %s63 = sphi 0, %s60
      %s64 = sphi 0, %s63
      %s80 = sphi 0, %s64
      %s86 = sphi 0, %s88
      %s89 = sphi 0, %s86
      %s90 = sphi 0, %s89
      %s106 = sphi 0, %s90
      %s112 = sphi 0, %s114
      %s115 = sphi 0, %s112
      %s116 = sphi 0, %s115
      %s132 = sphi 0, %s116
      %s140 = sphi 0, %s142
      %s143 = sphi 0, %s140
      %s144 = sphi 0, %s143
      %s160 = sphi 0, %s144
      %s164 = sphi 0, %s164
      %s166 = sphi 0, %s164
      %s167 = sphi 0, %s166
      %s181 = sphi 0, %s167
      %s185 = sphi 0, %s185
      %s187 = sphi 0, %s185
      %s188 = sphi 0, %s187
      %s202 = sphi 0, %s188
      %s206 = sphi 0, %s206
      %s208 = sphi 0, %s206
      %s209 = sphi 0, %s208
      %s223 = sphi 0, %s209
      %s227 = sphi 0, %s227
      %s229 = sphi 0, %s227
      %s230 = sphi 0, %s229
      %s244 = sphi 0, %s230
      %s248 = sphi 0, %s248
      %s250 = sphi 0, %s248
      %s251 = sphi 0, %s250
      %s265 = sphi 0, %s251
      %s269 = sphi 0, %s269
      %s271 = sphi 0, %s269
      %s272 = sphi 0, %s271
      %s286 = sphi 0, %s272
      %s294 = sphi 0, %s296
      %s297 = sphi 0, %s294
      %s298 = sphi 0, %s297
      %s314 = sphi 0, %s298
      %s322 = sphi 0, %s324
      %s325 = sphi 0, %s322
      %s326 = sphi 0, %s325
      %s342 = sphi 0, %s326
    $region4: #{tpu_custom_call.1} parent=1 // loop_header_branch
      %39 = sbr.rel (%p37) target = $region8
    $region5: #{tpu_custom_call.1} parent=1 // loop_body
      %s41 = ssub.s32 %s36, 1
      %s42 = ssub.s32 %s36, 2
      %s49 = sadd.s32 1, %s44
      %p50 = scmp.ge.s32.totalorder %s49, 1
      %s51 = scalar_select %p50, 0, %s49
      %s52 = sadd.s32 1, %s43
      %s53 = scalar_select %p50, %s52, %s43
      %p54 = scmp.ge.s32.totalorder %s53, 2
      %s55 = scalar_select %p54, 0, %s53
      %s56 = ssub.s32 %s43, %s55
      %s57 = ssub.s32 %s44, %s51
      %s58 = sor.u32 %s56, %s57
      %p59 = scmp.eq.s32.totalorder %s58, 0
      %s61 = sadd.s32 %s60, 1
      %s62 = scalar_select %p59, %s60, %s61
      %p65 = pneg %p59
      %p66 = scmp.eq.s32.totalorder %s36, 1
      %p67 = por %p65, %p66
      %p68 = scmp.ne.s32.totalorder %s60, %s63
      %p69 = scmp.eq.s32.totalorder %s36, 0
      %p70 = por %p68, %p69
      %p71 = scmp.ne.s32.totalorder %s60, %s63
      %p72 = scmp.eq.s32.totalorder %s41, 1
      %p73 = por %p71, %p72
      %p74 = scmp.ne.s32.totalorder %s63, %s64
      %p75 = scmp.eq.s32.totalorder %s41, 0
      %p76 = por %p74, %p75
      %p77 = scmp.ne.s32.totalorder %s63, %s64
      %p78 = scmp.eq.s32.totalorder %s42, 1
      %p79 = por %p77, %p78
      %p81 = scmp.ne.s32.totalorder %s64, %s80
      %p82 = scmp.eq.s32.totalorder %s42, 0
      %p83 = por %p81, %p82
      %s84 = ssub.s32 %s43, %s55
      %p85 = scmp.eq.s32.totalorder %s84, 0
      %s87 = sadd.s32 %s86, 1
      %s88 = scalar_select %p85, %s86, %s87
      %p91 = pneg %p85
      %p92 = scmp.eq.s32.totalorder %s36, 1
      %p93 = por %p91, %p92
      %p94 = scmp.ne.s32.totalorder %s86, %s89
      %p95 = scmp.eq.s32.totalorder %s36, 0
      %p96 = por %p94, %p95
      %p97 = scmp.ne.s32.totalorder %s86, %s89
      %p98 = scmp.eq.s32.totalorder %s41, 1
      %p99 = por %p97, %p98
      %p100 = scmp.ne.s32.totalorder %s89, %s90
      %p101 = scmp.eq.s32.totalorder %s41, 0
      %p102 = por %p100, %p101
      %p103 = scmp.ne.s32.totalorder %s89, %s90
      %p104 = scmp.eq.s32.totalorder %s42, 1
      %p105 = por %p103, %p104
      %p107 = scmp.ne.s32.totalorder %s90, %s106
      %p108 = scmp.eq.s32.totalorder %s42, 0
      %p109 = por %p107, %p108
      %s110 = ssub.s32 %s43, %s55
      %p111 = scmp.eq.s32.totalorder %s110, 0
      %s113 = sadd.s32 %s112, 1
      %s114 = scalar_select %p111, %s112, %s113
      %p117 = pneg %p111
      %p118 = scmp.eq.s32.totalorder %s36, 1
      %p119 = por %p117, %p118
      %p120 = scmp.ne.s32.totalorder %s112, %s115
      %p121 = scmp.eq.s32.totalorder %s36, 0
      %p122 = por %p120, %p121
      %p123 = scmp.ne.s32.totalorder %s112, %s115
      %p124 = scmp.eq.s32.totalorder %s41, 1
      %p125 = por %p123, %p124
      %p126 = scmp.ne.s32.totalorder %s115, %s116
      %p127 = scmp.eq.s32.totalorder %s41, 0
      %p128 = por %p126, %p127
      %p129 = scmp.ne.s32.totalorder %s115, %s116
      %p130 = scmp.eq.s32.totalorder %s42, 1
      %p131 = por %p129, %p130
      %p133 = scmp.ne.s32.totalorder %s116, %s132
      %p134 = scmp.eq.s32.totalorder %s42, 0
      %p135 = por %p133, %p134
      %s136 = ssub.s32 %s43, %s55
      %s137 = ssub.s32 %s44, %s51
      %s138 = sor.u32 %s136, %s137
      %p139 = scmp.eq.s32.totalorder %s138, 0
      %s141 = sadd.s32 %s140, 1
      %s142 = scalar_select %p139, %s140, %s141
      %p145 = pneg %p139
      %p146 = scmp.eq.s32.totalorder %s36, 1
      %p147 = por %p145, %p146
      %p148 = scmp.ne.s32.totalorder %s140, %s143
      %p149 = scmp.eq.s32.totalorder %s36, 0
      %p150 = por %p148, %p149
      %p151 = scmp.ne.s32.totalorder %s140, %s143
      %p152 = scmp.eq.s32.totalorder %s41, 1
      %p153 = por %p151, %p152
      %p154 = scmp.ne.s32.totalorder %s143, %s144
      %p155 = scmp.eq.s32.totalorder %s41, 0
      %p156 = por %p154, %p155
      %p157 = scmp.ne.s32.totalorder %s143, %s144
      %p158 = scmp.eq.s32.totalorder %s42, 1
      %p159 = por %p157, %p158
      %p161 = scmp.ne.s32.totalorder %s144, %s160
      %p162 = scmp.eq.s32.totalorder %s42, 0
      %p163 = por %p161, %p162
      %s165 = sadd.s32 %s164, 1
      %p168 = scmp.eq.s32.totalorder %s36, 1
      %p169 = scmp.ne.s32.totalorder %s164, %s166
      %p170 = scmp.eq.s32.totalorder %s36, 0
      %p171 = por %p169, %p170
      %p172 = scmp.ne.s32.totalorder %s164, %s166
      %p173 = scmp.eq.s32.totalorder %s41, 1
      %p174 = por %p172, %p173
      %p175 = scmp.ne.s32.totalorder %s166, %s167
      %p176 = scmp.eq.s32.totalorder %s41, 0
      %p177 = por %p175, %p176
      %p178 = scmp.ne.s32.totalorder %s166, %s167
      %p179 = scmp.eq.s32.totalorder %s42, 1
      %p180 = por %p178, %p179
      %p182 = scmp.ne.s32.totalorder %s167, %s181
      %p183 = scmp.eq.s32.totalorder %s42, 0
      %p184 = por %p182, %p183
      %s186 = sadd.s32 %s185, 1
      %p189 = scmp.eq.s32.totalorder %s36, 1
      %p190 = scmp.ne.s32.totalorder %s185, %s187
      %p191 = scmp.eq.s32.totalorder %s36, 0
      %p192 = por %p190, %p191
      %p193 = scmp.ne.s32.totalorder %s185, %s187
      %p194 = scmp.eq.s32.totalorder %s41, 1
      %p195 = por %p193, %p194
      %p196 = scmp.ne.s32.totalorder %s187, %s188
      %p197 = scmp.eq.s32.totalorder %s41, 0
      %p198 = por %p196, %p197
      %p199 = scmp.ne.s32.totalorder %s187, %s188
      %p200 = scmp.eq.s32.totalorder %s42, 1
      %p201 = por %p199, %p200
      %p203 = scmp.ne.s32.totalorder %s188, %s202
      %p204 = scmp.eq.s32.totalorder %s42, 0
      %p205 = por %p203, %p204
      %s207 = sadd.s32 %s206, 1
      %p210 = scmp.eq.s32.totalorder %s36, 1
      %p211 = scmp.ne.s32.totalorder %s206, %s208
      %p212 = scmp.eq.s32.totalorder %s36, 0
      %p213 = por %p211, %p212
      %p214 = scmp.ne.s32.totalorder %s206, %s208
      %p215 = scmp.eq.s32.totalorder %s41, 1
      %p216 = por %p214, %p215
      %p217 = scmp.ne.s32.totalorder %s208, %s209
      %p218 = scmp.eq.s32.totalorder %s41, 0
      %p219 = por %p217, %p218
      %p220 = scmp.ne.s32.totalorder %s208, %s209
      %p221 = scmp.eq.s32.totalorder %s42, 1
      %p222 = por %p220, %p221
      %p224 = scmp.ne.s32.totalorder %s209, %s223
      %p225 = scmp.eq.s32.totalorder %s42, 0
      %p226 = por %p224, %p225
      %s228 = sadd.s32 %s227, 1
      %p231 = scmp.eq.s32.totalorder %s36, 1
      %p232 = scmp.ne.s32.totalorder %s227, %s229
      %p233 = scmp.eq.s32.totalorder %s36, 0
      %p234 = por %p232, %p233
      %p235 = scmp.ne.s32.totalorder %s227, %s229
      %p236 = scmp.eq.s32.totalorder %s41, 1
      %p237 = por %p235, %p236
      %p238 = scmp.ne.s32.totalorder %s229, %s230
      %p239 = scmp.eq.s32.totalorder %s41, 0
      %p240 = por %p238, %p239
      %p241 = scmp.ne.s32.totalorder %s229, %s230
      %p242 = scmp.eq.s32.totalorder %s42, 1
      %p243 = por %p241, %p242
      %p245 = scmp.ne.s32.totalorder %s230, %s244
      %p246 = scmp.eq.s32.totalorder %s42, 0
      %p247 = por %p245, %p246
      %s249 = sadd.s32 %s248, 1
      %p252 = scmp.eq.s32.totalorder %s36, 1
      %p253 = scmp.ne.s32.totalorder %s248, %s250
      %p254 = scmp.eq.s32.totalorder %s36, 0
      %p255 = por %p253, %p254
      %p256 = scmp.ne.s32.totalorder %s248, %s250
      %p257 = scmp.eq.s32.totalorder %s41, 1
      %p258 = por %p256, %p257
      %p259 = scmp.ne.s32.totalorder %s250, %s251
      %p260 = scmp.eq.s32.totalorder %s41, 0
      %p261 = por %p259, %p260
      %p262 = scmp.ne.s32.totalorder %s250, %s251
      %p263 = scmp.eq.s32.totalorder %s42, 1
      %p264 = por %p262, %p263
      %p266 = scmp.ne.s32.totalorder %s251, %s265
      %p267 = scmp.eq.s32.totalorder %s42, 0
      %p268 = por %p266, %p267
      %s270 = sadd.s32 %s269, 1
      %p273 = scmp.eq.s32.totalorder %s36, 1
      %p274 = scmp.ne.s32.totalorder %s269, %s271
      %p275 = scmp.eq.s32.totalorder %s36, 0
      %p276 = por %p274, %p275
      %p277 = scmp.ne.s32.totalorder %s269, %s271
      %p278 = scmp.eq.s32.totalorder %s41, 1
      %p279 = por %p277, %p278
      %p280 = scmp.ne.s32.totalorder %s271, %s272
      %p281 = scmp.eq.s32.totalorder %s41, 0
      %p282 = por %p280, %p281
      %p283 = scmp.ne.s32.totalorder %s271, %s272
      %p284 = scmp.eq.s32.totalorder %s42, 1
      %p285 = por %p283, %p284
      %p287 = scmp.ne.s32.totalorder %s272, %s286
      %p288 = scmp.eq.s32.totalorder %s42, 0
      %p289 = por %p287, %p288
      %s290 = ssub.s32 %s43, %s55
      %s291 = ssub.s32 %s44, %s51
      %s292 = sor.u32 %s290, %s291
      %p293 = scmp.eq.s32.totalorder %s292, 0
      %s295 = sadd.s32 %s294, 1
      %s296 = scalar_select %p293, %s294, %s295
      %p299 = pneg %p293
      %p300 = scmp.eq.s32.totalorder %s36, 1
      %p301 = por %p299, %p300
      %p302 = scmp.ne.s32.totalorder %s294, %s297
      %p303 = scmp.eq.s32.totalorder %s36, 0
      %p304 = por %p302, %p303
      %p305 = scmp.ne.s32.totalorder %s294, %s297
      %p306 = scmp.eq.s32.totalorder %s41, 1
      %p307 = por %p305, %p306
      %p308 = scmp.ne.s32.totalorder %s297, %s298
      %p309 = scmp.eq.s32.totalorder %s41, 0
      %p310 = por %p308, %p309
      %p311 = scmp.ne.s32.totalorder %s297, %s298
      %p312 = scmp.eq.s32.totalorder %s42, 1
      %p313 = por %p311, %p312
      %p315 = scmp.ne.s32.totalorder %s298, %s314
      %p316 = scmp.eq.s32.totalorder %s42, 0
      %p317 = por %p315, %p316
      %s318 = ssub.s32 %s43, %s55
      %s319 = ssub.s32 %s44, %s51
      %s320 = sor.u32 %s318, %s319
      %p321 = scmp.eq.s32.totalorder %s320, 0
      %s323 = sadd.s32 %s322, 1
      %s324 = scalar_select %p321, %s322, %s323
      %p327 = pneg %p321
      %p328 = scmp.eq.s32.totalorder %s36, 1
      %p329 = por %p327, %p328
      %p330 = scmp.ne.s32.totalorder %s322, %s325
      %p331 = scmp.eq.s32.totalorder %s36, 0
      %p332 = por %p330, %p331
      %p333 = scmp.ne.s32.totalorder %s322, %s325
      %p334 = scmp.eq.s32.totalorder %s41, 1
      %p335 = por %p333, %p334
      %p336 = scmp.ne.s32.totalorder %s325, %s326
      %p337 = scmp.eq.s32.totalorder %s41, 0
      %p338 = por %p336, %p337
      %p339 = scmp.ne.s32.totalorder %s325, %s326
      %p340 = scmp.eq.s32.totalorder %s42, 1
      %p341 = por %p339, %p340
      %p343 = scmp.ne.s32.totalorder %s326, %s342
      %p344 = scmp.eq.s32.totalorder %s42, 0
      %p345 = por %p343, %p344
      %p346 = scmp.le.s32.totalorder 1, %s36
      %p347 = scmp.lt.s32.totalorder %s36, 3
      %p348 = pnand %p346, %p347
      %p349 = pneg %p348
      // Predicated region
      $region9: #{tpu_custom_call.1} parent=5 // pred_check
        _
      $region10: #{tpu_custom_call.1} parent=5 // pred_check_branch
        %351 = sbr.rel (%p348) target = $region12
      $region11: #{tpu_custom_call.1} parent=5 // pred_region
        %s352 = ssub.s32 %s36, 1
        // Predicated region
        $region13: #{tpu_custom_call.1} parent=11 // pred_check
          %p353 = pneg %p177
        $region14: #{tpu_custom_call.1} parent=11 // pred_check_branch
          %355 = sbr.rel (%p353) target = $region16
        $region15: #{tpu_custom_call.1} parent=11 // pred_region
          %s357 = ssub.s32 512, 512
          %358 = vsyncadd [#allocation11], %s357
          %s359 = sshll.u32 [#allocation12], 4
          %s360 = int_to_ptr.vmem [resolvable:$true] %s359
          %365 = dma.hbm_to_vmem [thread:$0]  %s4, 512, %s360, [#allocation11], 128, 128, 8
        $region16: #{tpu_custom_call.1} parent=11 // pred_fallthru
          _
        // Predicated region
        $region17: #{tpu_custom_call.1} parent=11 // pred_check
          %p366 = pneg %p198
        $region18: #{tpu_custom_call.1} parent=11 // pred_check_branch
          %368 = sbr.rel (%p366) target = $region20
        $region19: #{tpu_custom_call.1} parent=11 // pred_region
          %s370 = ssub.s32 512, 512
          %371 = vsyncadd [#allocation14], %s370
          %s372 = sshll.u32 [#allocation13], 4
          %s373 = int_to_ptr.vmem [resolvable:$true] %s372
          %378 = dma.hbm_to_vmem [thread:$0]  %s5, 512, %s373, [#allocation14], 128, 128, 8
        $region20: #{tpu_custom_call.1} parent=11 // pred_fallthru
          _
        // Predicated region
        $region21: #{tpu_custom_call.1} parent=11 // pred_check
          %p379 = pneg %p219
        $region22: #{tpu_custom_call.1} parent=11 // pred_check_branch
          %381 = sbr.rel (%p379) target = $region24
        $region23: #{tpu_custom_call.1} parent=11 // pred_region
          %s383 = ssub.s32 512, 512
          %384 = vsyncadd [#allocation14], %s383
          %s385 = sshll.u32 [#allocation15], 4
          %s386 = int_to_ptr.vmem [resolvable:$true] %s385
          %391 = dma.hbm_to_vmem [thread:$0]  %s6, 512, %s386, [#allocation14], 128, 128, 8
        $region24: #{tpu_custom_call.1} parent=11 // pred_fallthru
          _
        // Predicated region
        $region25: #{tpu_custom_call.1} parent=11 // pred_check
          %p392 = pneg %p240
        $region26: #{tpu_custom_call.1} parent=11 // pred_check_branch
          %394 = sbr.rel (%p392) target = $region28
        $region27: #{tpu_custom_call.1} parent=11 // pred_region
          %s396 = ssub.s32 512, 512
          %397 = vsyncadd [#allocation17], %s396
          %s398 = sshll.u32 [#allocation16], 4
          %s399 = int_to_ptr.vmem [resolvable:$true] %s398
          %404 = dma.hbm_to_vmem [thread:$0]  %s7, 512, %s399, [#allocation17], 128, 128, 8
        $region28: #{tpu_custom_call.1} parent=11 // pred_fallthru
          _
        // Predicated region
        $region29: #{tpu_custom_call.1} parent=11 // pred_check
          %p405 = pneg %p261
        $region30: #{tpu_custom_call.1} parent=11 // pred_check_branch
          %407 = sbr.rel (%p405) target = $region32
        $region31: #{tpu_custom_call.1} parent=11 // pred_region
          %s409 = ssub.s32 16, 16
          %410 = vsyncadd [#allocation17], %s409
          %s412 = sshll.u32 [#allocation18], 4
          %s413 = int_to_ptr.vmem [resolvable:$true] %s412
          %415 = dma.hbm_to_vmem [thread:$0]  %s8, 16, %s413, [#allocation17]
        $region32: #{tpu_custom_call.1} parent=11 // pred_fallthru
          _
        // Predicated region
        $region33: #{tpu_custom_call.1} parent=11 // pred_check
          %p416 = pneg %p282
        $region34: #{tpu_custom_call.1} parent=11 // pred_check_branch
          %418 = sbr.rel (%p416) target = $region36
        $region35: #{tpu_custom_call.1} parent=11 // pred_region
          %s420 = ssub.s32 16, 16
          %421 = vsyncadd [#allocation20], %s420
          %s423 = sshll.u32 [#allocation19], 4
          %s424 = int_to_ptr.vmem [resolvable:$true] %s423
          %426 = dma.hbm_to_vmem [thread:$0]  %s9, 16, %s424, [#allocation20]
        $region36: #{tpu_custom_call.1} parent=11 // pred_fallthru
          _
      $region12: #{tpu_custom_call.1} parent=5 // pred_fallthru
        _
      %p427 = scmp.lt.s32.totalorder %s36, 2
      // Predicated region
      $region37: #{tpu_custom_call.1} parent=5 // pred_check
        %p428 = pneg %p427
      $region38: #{tpu_custom_call.1} parent=5 // pred_check_branch
        %430 = sbr.rel (%p428) target = $region40
      $region39: #{tpu_custom_call.1} parent=5 // pred_region
        // Predicated region
        $region41: #{tpu_custom_call.1} parent=39 // pred_check
          %p431 = pneg %p70
        $region42: #{tpu_custom_call.1} parent=39 // pred_check_branch
          %433 = sbr.rel (%p431) target = $region44
        $region43: #{tpu_custom_call.1} parent=39 // pred_region
          %s434 = sand.u32 %s60, 1
          %s435 = scalar_lea.sflag [#allocation5], %s434
          %s436 = sand.u32 %s60, 1
          %s437 = smul.addr %s436, 8
          %s438 = scalar_lea.vmem [#allocation4], %s437
          %s440 = ssub.s32 128, 128
          %441 = vsyncadd %s435, %s440
          %s442 = sadd.s32 %s44, %s43
          %s443 = smul.addr %s442, 128
          %s444 = scalar_lea.hbm %s0, %s443
          %s446 = sshll.u32 %s438, 4
          %s447 = int_to_ptr.vmem [resolvable:$true] %s446
          %449 = dma.hbm_to_vmem [thread:$0]  %s444, 128, %s447, %s435
        $region44: #{tpu_custom_call.1} parent=39 // pred_fallthru
          _
        // Predicated region
        $region45: #{tpu_custom_call.1} parent=39 // pred_check
          %p450 = pneg %p96
        $region46: #{tpu_custom_call.1} parent=39 // pred_check_branch
          %452 = sbr.rel (%p450) target = $region48
        $region47: #{tpu_custom_call.1} parent=39 // pred_region
          %s453 = sand.u32 %s36, 1
          %s454 = scalar_lea.sflag [#allocation8], %s453
          %s455 = sand.u32 %s86, 1
          %s456 = smul.addr %s455, 8
          %s457 = scalar_lea.vmem [#allocation7], %s456
          %s459 = ssub.s32 128, 128
          %460 = vsyncadd %s454, %s459
          %s461 = smul.addr %s43, 128
          %s462 = scalar_lea.hbm %s1, %s461
          %s464 = sshll.u32 %s457, 4
          %s465 = int_to_ptr.vmem [resolvable:$true] %s464
          %467 = dma.hbm_to_vmem [thread:$0]  %s462, 128, %s465, %s454
        $region48: #{tpu_custom_call.1} parent=39 // pred_fallthru
          _
        // Predicated region
        $region49: #{tpu_custom_call.1} parent=39 // pred_check
          %p468 = pneg %p122
        $region50: #{tpu_custom_call.1} parent=39 // pred_check_branch
          %470 = sbr.rel (%p468) target = $region52
        $region51: #{tpu_custom_call.1} parent=39 // pred_region
          %s471 = sand.u32 %s36, 1
          %s472 = scalar_lea.sflag [#allocation8], %s471
          %s473 = sand.u32 %s112, 1
          %s474 = smul.addr %s473, 8
          %s475 = scalar_lea.vmem [#allocation9], %s474
          %s477 = ssub.s32 128, 128
          %478 = vsyncadd %s472, %s477
          %s479 = smul.addr %s43, 128
          %s480 = scalar_lea.hbm %s2, %s479
          %s482 = sshll.u32 %s475, 4
          %s483 = int_to_ptr.vmem [resolvable:$true] %s482
          %485 = dma.hbm_to_vmem [thread:$0]  %s480, 128, %s483, %s472
        $region52: #{tpu_custom_call.1} parent=39 // pred_fallthru
          _
        // Predicated region
        $region53: #{tpu_custom_call.1} parent=39 // pred_check
          %p486 = pneg %p150
        $region54: #{tpu_custom_call.1} parent=39 // pred_check_branch
          %488 = sbr.rel (%p486) target = $region56
        $region55: #{tpu_custom_call.1} parent=39 // pred_region
          %s489 = sand.u32 %s36, 1
          %s490 = scalar_lea.sflag [#allocation11], %s489
          %s491 = sand.u32 %s140, 1
          %s492 = smul.addr %s491, 2
          %s493 = scalar_lea.vmem [#allocation10], %s492
          %s495 = ssub.s32 32, 32
          %496 = vsyncadd %s490, %s495
          %s497 = sadd.s32 %s44, %s43
          %s498 = smul.addr %s497, 32
          %s499 = scalar_lea.hbm %s3, %s498
          %s501 = sshll.u32 %s493, 4
          %s502 = int_to_ptr.vmem [resolvable:$true] %s501
          %504 = dma.hbm_to_vmem [thread:$0]  %s499, 32, %s502, %s490
        $region56: #{tpu_custom_call.1} parent=39 // pred_fallthru
          _
      $region40: #{tpu_custom_call.1} parent=5 // pred_fallthru
        _
      %p505 = scmp.le.s32.totalorder 1, %s36
      %p506 = scmp.lt.s32.totalorder %s36, 3
      %p507 = pnand %p505, %p506
      %p508 = pneg %p507
      // Predicated region
      $region57: #{tpu_custom_call.1} parent=5 // pred_check
        _
      $region58: #{tpu_custom_call.1} parent=5 // pred_check_branch
        %510 = sbr.rel (%p507) target = $region60
      $region59: #{tpu_custom_call.1} parent=5 // pred_region
        %s511 = ssub.s32 %s36, 1
        %s512 = sand.u32 %s63, 1
        %s513 = scalar_lea.sflag [#allocation5], %s512
        %s514 = sand.u32 %s63, 1
        %s515 = smul.addr %s514, 8
        %s516 = scalar_lea.vmem [#allocation4], %s515
        // Predicated region
        $region61: #{tpu_custom_call.1} parent=59 // pred_check
          %p517 = pneg %p76
        $region62: #{tpu_custom_call.1} parent=59 // pred_check_branch
          %519 = sbr.rel (%p517) target = $region64
        $region63: #{tpu_custom_call.1} parent=59 // pred_region
          %520 = dma.done %s513, 128
        $region64: #{tpu_custom_call.1} parent=59 // pred_fallthru
          _
        %s521 = sand.u32 %s41, 1
        %s522 = scalar_lea.sflag [#allocation8], %s521
        %s523 = sand.u32 %s89, 1
        %s524 = smul.addr %s523, 8
        %s525 = scalar_lea.vmem [#allocation7], %s524
        // Predicated region
        $region65: #{tpu_custom_call.1} parent=59 // pred_check
          %p526 = pneg %p102
        $region66: #{tpu_custom_call.1} parent=59 // pred_check_branch
          %528 = sbr.rel (%p526) target = $region68
        $region67: #{tpu_custom_call.1} parent=59 // pred_region
          %529 = dma.done %s522, 128
        $region68: #{tpu_custom_call.1} parent=59 // pred_fallthru
          _
        %s530 = sand.u32 %s41, 1
        %s531 = scalar_lea.sflag [#allocation8], %s530
        %s532 = sand.u32 %s115, 1
        %s533 = smul.addr %s532, 8
        %s534 = scalar_lea.vmem [#allocation9], %s533
        // Predicated region
        $region69: #{tpu_custom_call.1} parent=59 // pred_check
          %p535 = pneg %p128
        $region70: #{tpu_custom_call.1} parent=59 // pred_check_branch
          %537 = sbr.rel (%p535) target = $region72
        $region71: #{tpu_custom_call.1} parent=59 // pred_region
          %538 = dma.done %s531, 128
        $region72: #{tpu_custom_call.1} parent=59 // pred_fallthru
          _
        %s539 = sand.u32 %s41, 1
        %s540 = scalar_lea.sflag [#allocation11], %s539
        %s541 = sand.u32 %s143, 1
        %s542 = smul.addr %s541, 2
        %s543 = scalar_lea.vmem [#allocation10], %s542
        // Predicated region
        $region73: #{tpu_custom_call.1} parent=59 // pred_check
          %p544 = pneg %p156
        $region74: #{tpu_custom_call.1} parent=59 // pred_check_branch
          %546 = sbr.rel (%p544) target = $region76
        $region75: #{tpu_custom_call.1} parent=59 // pred_region
          %547 = dma.done %s540, 32
        $region76: #{tpu_custom_call.1} parent=59 // pred_fallthru
          _
        // Predicated region
        $region77: #{tpu_custom_call.1} parent=59 // pred_check
          %p548 = pneg %p177
        $region78: #{tpu_custom_call.1} parent=59 // pred_check_branch
          %550 = sbr.rel (%p548) target = $region80
        $region79: #{tpu_custom_call.1} parent=59 // pred_region
          %551 = dma.done [#allocation11], 512
        $region80: #{tpu_custom_call.1} parent=59 // pred_fallthru
          _
        // Predicated region
        $region81: #{tpu_custom_call.1} parent=59 // pred_check
          %p552 = pneg %p198
        $region82: #{tpu_custom_call.1} parent=59 // pred_check_branch
          %554 = sbr.rel (%p552) target = $region84
        $region83: #{tpu_custom_call.1} parent=59 // pred_region
          %555 = dma.done [#allocation14], 512
        $region84: #{tpu_custom_call.1} parent=59 // pred_fallthru
          _
        // Predicated region
        $region85: #{tpu_custom_call.1} parent=59 // pred_check
          %p556 = pneg %p219
        $region86: #{tpu_custom_call.1} parent=59 // pred_check_branch
          %558 = sbr.rel (%p556) target = $region88
        $region87: #{tpu_custom_call.1} parent=59 // pred_region
          %559 = dma.done [#allocation14], 512
        $region88: #{tpu_custom_call.1} parent=59 // pred_fallthru
          _
        // Predicated region
        $region89: #{tpu_custom_call.1} parent=59 // pred_check
          %p560 = pneg %p240
        $region90: #{tpu_custom_call.1} parent=59 // pred_check_branch
          %562 = sbr.rel (%p560) target = $region92
        $region91: #{tpu_custom_call.1} parent=59 // pred_region
          %563 = dma.done [#allocation17], 512
        $region92: #{tpu_custom_call.1} parent=59 // pred_fallthru
          _
        // Predicated region
        $region93: #{tpu_custom_call.1} parent=59 // pred_check
          %p564 = pneg %p261
        $region94: #{tpu_custom_call.1} parent=59 // pred_check_branch
          %566 = sbr.rel (%p564) target = $region96
        $region95: #{tpu_custom_call.1} parent=59 // pred_region
          %567 = dma.done [#allocation17], 16
        $region96: #{tpu_custom_call.1} parent=59 // pred_fallthru
          _
        // Predicated region
        $region97: #{tpu_custom_call.1} parent=59 // pred_check
          %p568 = pneg %p282
        $region98: #{tpu_custom_call.1} parent=59 // pred_check_branch
          %570 = sbr.rel (%p568) target = $region100
        $region99: #{tpu_custom_call.1} parent=59 // pred_region
          %571 = dma.done [#allocation20], 16
        $region100: #{tpu_custom_call.1} parent=59 // pred_fallthru
          _
        %s572 = sand.u32 %s63, 1
        %s573 = scalar_lea.sflag [#allocation5], %s572
        %s574 = sand.u32 %s63, 1
        %s575 = smul.addr %s574, 8
        %s576 = scalar_lea.vmem [#allocation4], %s575
        %p577 = pneg %p76
        %p578 = pneg %p73
        %s579 = sand.u32 %s41, 1
        %s580 = scalar_lea.sflag [#allocation8], %s579
        %s581 = sand.u32 %s89, 1
        %s582 = smul.addr %s581, 8
        %s583 = scalar_lea.vmem [#allocation7], %s582
        %p584 = pneg %p102
        %p585 = pneg %p99
        %s586 = sand.u32 %s41, 1
        %s587 = scalar_lea.sflag [#allocation8], %s586
        %s588 = sand.u32 %s115, 1
        %s589 = smul.addr %s588, 8
        %s590 = scalar_lea.vmem [#allocation9], %s589
        %p591 = pneg %p128
        %p592 = pneg %p125
        %s593 = sand.u32 %s41, 1
        %s594 = scalar_lea.sflag [#allocation11], %s593
        %s595 = sand.u32 %s143, 1
        %s596 = smul.addr %s595, 2
        %s597 = scalar_lea.vmem [#allocation10], %s596
        %p598 = pneg %p156
        %p599 = pneg %p153
        %p600 = pneg %p177
        %p601 = pneg %p174
        %p602 = pneg %p198
        %p603 = pneg %p195
        %p604 = pneg %p219
        %p605 = pneg %p216
        %p606 = pneg %p240
        %p607 = pneg %p237
        %p608 = pneg %p261
        %p609 = pneg %p258
        %p610 = pneg %p282
        %p611 = pneg %p279
        %p612 = pneg %p310
        %p613 = pneg %p307
        %s614 = sand.u32 %s297, 1
        %s615 = scalar_lea.sflag [#allocation6], %s614
        %s616 = sand.u32 %s297, 1
        %s617 = smul.addr %s616, 8
        %s618 = scalar_lea.vmem [#allocation21], %s617
        %p619 = pneg %p338
        %p620 = pneg %p335
        %s621 = sand.u32 %s325, 1
        %s622 = scalar_lea.sflag [#allocation23], %s621
        %s623 = sand.u32 %s325, 1
        %s624 = smul.addr %s623, 32
        %s625 = scalar_lea.vmem [#allocation22], %s624
        %p628 = scmp.eq.s32.totalorder %s46, 0
        // Predicated region
        $region101: #{tpu_custom_call.1} parent=59 // pred_check
          %p629 = pneg %p628
        $region102: #{tpu_custom_call.1} parent=59 // pred_check_branch
          %631 = sbr.rel (%p629) target = $region104
        $region103: #{tpu_custom_call.1} parent=59 // pred_region
          %v632 = vld [vmem:[%s525] sm:$0xff]
          %v633 = vld [vmem:[%s534] sm:$0xff]
          %v634 = vld [vmem:[#allocation13] sm:$0xff]
          %v635 = vld [vmem:[#allocation13 + $0x8] sm:$0xff]
          %v636 = vld [vmem:[#allocation13 + $0x10] sm:$0xff]
          %v637 = vld [vmem:[#allocation13 + $0x18] sm:$0xff]
          %vm638 = vcmask 261120
          %v640 = vsel %vm638, %v632, 0
          %642 = vmatprep.subr.mxu0 0.0
          %643 = vmatpush1.msra.mxu0 %v634
          %644 = vmatprep.subr.mxu0 0.0
          %645 = vmatpush1.msra.mxu0 %v635
          %646 = vmatprep.subr.mxu0 0.0
          %647 = vmatpush1.msra.mxu0 %v636
          %648 = vmatprep.subr.mxu0 0.0
          %649 = vmatpush1.msra.mxu0 %v637
          %650 = vmatprep.subr.mxu0 0.0
          %651 = vmatpush1.msra.mxu0 0.0
          %652 = vmatprep.subr.mxu0 0.0
          %653 = vmatpush1.msra.mxu0 0.0
          %654 = vmatprep.subr.mxu0 0.0
          %655 = vmatpush1.msra.mxu0 0.0
          %656 = vmatprep.subr.mxu0 0.0
          %657 = vmatpush1.msra.mxu0 0.0
          %658 = vmatprep.subr.mxu0 0.0
          %659 = vmatpush1.msra.mxu0 0.0
          %660 = vmatprep.subr.mxu0 0.0
          %661 = vmatpush1.msra.mxu0 0.0
          %662 = vmatprep.subr.mxu0 0.0
          %663 = vmatpush1.msra.mxu0 0.0
          %664 = vmatprep.subr.mxu0 0.0
          %665 = vmatpush1.msra.mxu0 0.0
          %666 = vmatprep.subr.mxu0 0.0
          %667 = vmatpush1.msra.mxu0 0.0
          %668 = vmatprep.subr.mxu0 0.0
          %669 = vmatpush1.msra.mxu0 0.0
          %670 = vmatprep.subr.mxu0 0.0
          %671 = vmatpush1.msra.mxu0 0.0
          %672 = vmatprep.subr.mxu0 0.0
          %673 = vmatpush1.msra.mxu0 0.0
          %674 = vmatprep.subr.mxu0 0.0
          %675 = vmatpush1.msra.mxu0 0.0
          %676 = vmatprep.subr.mxu0 0.0
          %677 = vmatpush1.msra.mxu0 0.0
          %678 = vmatprep.subr.mxu0 0.0
          %679 = vmatpush1.msra.mxu0 0.0
          %680 = vmatprep.subr.mxu0 0.0
          %681 = vmatpush1.msra.mxu0 0.0
          %682 = vmatprep.subr.mxu0 0.0
          %683 = vmatpush1.msra.mxu0 0.0
          %684 = vmatprep.subr.mxu0 0.0
          %685 = vmatpush1.msra.mxu0 0.0
          %686 = vmatprep.subr.mxu0 0.0
          %687 = vmatpush1.msra.mxu0 0.0
          %688 = vmatprep.subr.mxu0 0.0
          %689 = vmatpush1.msra.mxu0 0.0
          %690 = vmatprep.subr.mxu0 0.0
          %691 = vmatpush1.msra.mxu0 0.0
          %692 = vmatprep.subr.mxu0 0.0
          %693 = vmatpush1.msra.mxu0 0.0
          %694 = vmatprep.subr.mxu0 0.0
          %695 = vmatpush1.msra.mxu0 0.0
          %696 = vmatprep.subr.mxu0 0.0
          %697 = vmatpush1.msra.mxu0 0.0
          %698 = vmatprep.subr.mxu0 0.0
          %699 = vmatpush1.msra.mxu0 0.0
          %700 = vmatprep.subr.mxu0 0.0
          %701 = vmatpush1.msra.mxu0 0.0
          %702 = vmatprep.subr.mxu0 0.0
          %703 = vmatpush1.msra.mxu0 0.0
          %704 = vmatprep.subr.mxu0 0.0
          %705 = vmatpush1.msra.mxu0 0.0
          %706 = vmatprep.mubr.f32.mxu0 0.0
          %707 = vmatmul.mubr.f32.gmra.mrb[0].mxu0 %v640
          %v708 = vpop.f32.mrb[0].mxu0
          %v709 = vadd.f32 0.0, %v708
          %v710 = vpop.f32.mrb[0].mxu0
          %711 = vdwg.mxu0
          %712 = vst.msk [vmem:[#allocation2] sm:$0xff] %vm638, %v709
          %v713 = vld [vmem:[#allocation15] sm:$0xff]
          %v714 = vld [vmem:[#allocation15 + $0x8] sm:$0xff]
          %v715 = vld [vmem:[#allocation15 + $0x10] sm:$0xff]
          %v716 = vld [vmem:[#allocation15 + $0x18] sm:$0xff]
          %v718 = vsel %vm638, %v633, 0
          %720 = vmatprep.subr.mxu0 0.0
          %721 = vmatpush1.msra.mxu0 %v713
          %722 = vmatprep.subr.mxu0 0.0
          %723 = vmatpush1.msra.mxu0 %v714
          %724 = vmatprep.subr.mxu0 0.0
          %725 = vmatpush1.msra.mxu0 %v715
          %726 = vmatprep.subr.mxu0 0.0
          %727 = vmatpush1.msra.mxu0 %v716
          %728 = vmatprep.subr.mxu0 0.0
          %729 = vmatpush1.msra.mxu0 0.0
          %730 = vmatprep.subr.mxu0 0.0
          %731 = vmatpush1.msra.mxu0 0.0
          %732 = vmatprep.subr.mxu0 0.0
          %733 = vmatpush1.msra.mxu0 0.0
          %734 = vmatprep.subr.mxu0 0.0
          %735 = vmatpush1.msra.mxu0 0.0
          %736 = vmatprep.subr.mxu0 0.0
          %737 = vmatpush1.msra.mxu0 0.0
          %738 = vmatprep.subr.mxu0 0.0
          %739 = vmatpush1.msra.mxu0 0.0
          %740 = vmatprep.subr.mxu0 0.0
          %741 = vmatpush1.msra.mxu0 0.0
          %742 = vmatprep.subr.mxu0 0.0
          %743 = vmatpush1.msra.mxu0 0.0
          %744 = vmatprep.subr.mxu0 0.0
          %745 = vmatpush1.msra.mxu0 0.0
          %746 = vmatprep.subr.mxu0 0.0
          %747 = vmatpush1.msra.mxu0 0.0
          %748 = vmatprep.subr.mxu0 0.0
          %749 = vmatpush1.msra.mxu0 0.0
          %750 = vmatprep.subr.mxu0 0.0
          %751 = vmatpush1.msra.mxu0 0.0
          %752 = vmatprep.subr.mxu0 0.0
          %753 = vmatpush1.msra.mxu0 0.0
          %754 = vmatprep.subr.mxu0 0.0
          %755 = vmatpush1.msra.mxu0 0.0
          %756 = vmatprep.subr.mxu0 0.0
          %757 = vmatpush1.msra.mxu0 0.0
          %758 = vmatprep.subr.mxu0 0.0
          %759 = vmatpush1.msra.mxu0 0.0
          %760 = vmatprep.subr.mxu0 0.0
          %761 = vmatpush1.msra.mxu0 0.0
          %762 = vmatprep.subr.mxu0 0.0
          %763 = vmatpush1.msra.mxu0 0.0
          %764 = vmatprep.subr.mxu0 0.0
          %765 = vmatpush1.msra.mxu0 0.0
          %766 = vmatprep.subr.mxu0 0.0
          %767 = vmatpush1.msra.mxu0 0.0
          %768 = vmatprep.subr.mxu0 0.0
          %769 = vmatpush1.msra.mxu0 0.0
          %770 = vmatprep.subr.mxu0 0.0
          %771 = vmatpush1.msra.mxu0 0.0
          %772 = vmatprep.subr.mxu0 0.0
          %773 = vmatpush1.msra.mxu0 0.0
          %774 = vmatprep.subr.mxu0 0.0
          %775 = vmatpush1.msra.mxu0 0.0
          %776 = vmatprep.subr.mxu0 0.0
          %777 = vmatpush1.msra.mxu0 0.0
          %778 = vmatprep.subr.mxu0 0.0
          %779 = vmatpush1.msra.mxu0 0.0
          %780 = vmatprep.subr.mxu0 0.0
          %781 = vmatpush1.msra.mxu0 0.0
          %782 = vmatprep.subr.mxu0 0.0
          %783 = vmatpush1.msra.mxu0 0.0
          %784 = vmatprep.mubr.f32.mxu0 0.0
          %785 = vmatmul.mubr.f32.gmra.mrb[0].mxu0 %v718
          %v786 = vpop.f32.mrb[0].mxu0
          %v787 = vadd.f32 0.0, %v786
          %v788 = vpop.f32.mrb[0].mxu0
          %789 = vdwg.mxu0
          %790 = vst.msk [vmem:[#allocation3] sm:$0xff] %vm638, %v787
        $region104: #{tpu_custom_call.1} parent=59 // pred_fallthru
          _
        %v791 = vld [vmem:[%s516] sm:$0xff]
        %v792 = vld [vmem:[#allocation12] sm:$0xff]
        %v793 = vld [vmem:[#allocation12 + $0x8] sm:$0xff]
        %v794 = vld [vmem:[#allocation12 + $0x10] sm:$0xff]
        %v795 = vld [vmem:[#allocation12 + $0x18] sm:$0xff]
        %vm796 = vcmask 261120
        %v798 = vsel %vm796, %v791, 0
        %800 = vmatprep.subr.mxu0 0.0
        %801 = vmatpush1.msra.mxu0 %v792
        %802 = vmatprep.subr.mxu0 0.0
        %803 = vmatpush1.msra.mxu0 %v793
        %804 = vmatprep.subr.mxu0 0.0
        %805 = vmatpush1.msra.mxu0 %v794
        %806 = vmatprep.subr.mxu0 0.0
        %807 = vmatpush1.msra.mxu0 %v795
        %808 = vmatprep.subr.mxu0 0.0
        %809 = vmatpush1.msra.mxu0 0.0
        %810 = vmatprep.subr.mxu0 0.0
        %811 = vmatpush1.msra.mxu0 0.0
        %812 = vmatprep.subr.mxu0 0.0
        %813 = vmatpush1.msra.mxu0 0.0
        %814 = vmatprep.subr.mxu0 0.0
        %815 = vmatpush1.msra.mxu0 0.0
        %816 = vmatprep.subr.mxu0 0.0
        %817 = vmatpush1.msra.mxu0 0.0
        %818 = vmatprep.subr.mxu0 0.0
        %819 = vmatpush1.msra.mxu0 0.0
        %820 = vmatprep.subr.mxu0 0.0
        %821 = vmatpush1.msra.mxu0 0.0
        %822 = vmatprep.subr.mxu0 0.0
        %823 = vmatpush1.msra.mxu0 0.0
        %824 = vmatprep.subr.mxu0 0.0
        %825 = vmatpush1.msra.mxu0 0.0
        %826 = vmatprep.subr.mxu0 0.0
        %827 = vmatpush1.msra.mxu0 0.0
        %828 = vmatprep.subr.mxu0 0.0
        %829 = vmatpush1.msra.mxu0 0.0
        %830 = vmatprep.subr.mxu0 0.0
        %831 = vmatpush1.msra.mxu0 0.0
        %832 = vmatprep.subr.mxu0 0.0
        %833 = vmatpush1.msra.mxu0 0.0
        %834 = vmatprep.subr.mxu0 0.0
        %835 = vmatpush1.msra.mxu0 0.0
        %836 = vmatprep.subr.mxu0 0.0
        %837 = vmatpush1.msra.mxu0 0.0
        %838 = vmatprep.subr.mxu0 0.0
        %839 = vmatpush1.msra.mxu0 0.0
        %840 = vmatprep.subr.mxu0 0.0
        %841 = vmatpush1.msra.mxu0 0.0
        %842 = vmatprep.subr.mxu0 0.0
        %843 = vmatpush1.msra.mxu0 0.0
        %844 = vmatprep.subr.mxu0 0.0
        %845 = vmatpush1.msra.mxu0 0.0
        %846 = vmatprep.subr.mxu0 0.0
        %847 = vmatpush1.msra.mxu0 0.0
        %848 = vmatprep.subr.mxu0 0.0
        %849 = vmatpush1.msra.mxu0 0.0
        %850 = vmatprep.subr.mxu0 0.0
        %851 = vmatpush1.msra.mxu0 0.0
        %852 = vmatprep.subr.mxu0 0.0
        %853 = vmatpush1.msra.mxu0 0.0
        %854 = vmatprep.subr.mxu0 0.0
        %855 = vmatpush1.msra.mxu0 0.0
        %856 = vmatprep.subr.mxu0 0.0
        %857 = vmatpush1.msra.mxu0 0.0
        %858 = vmatprep.subr.mxu0 0.0
        %859 = vmatpush1.msra.mxu0 0.0
        %860 = vmatprep.subr.mxu0 0.0
        %861 = vmatpush1.msra.mxu0 0.0
        %862 = vmatprep.subr.mxu0 0.0
        %863 = vmatpush1.msra.mxu0 0.0
        %864 = vmatprep.mubr.f32.mxu0 0.0
        %865 = vmatmul.mubr.f32.gmra.mrb[0].mxu0 %v798
        %v866 = vpop.f32.mrb[0].mxu0
        %v867 = vadd.f32 0.0, %v866
        %v868 = vpop.f32.mrb[0].mxu0
        %869 = vdwg.mxu0
        %v870 = vld [vmem:[#allocation2] sm:$0xff]
        %v871 = vld [vmem:[#allocation3] sm:$0xff]
        %v872 = vld [vmem:[%s543] sm:$0x3]
        %vm873 = vcmask 64512
        %v875 = vsel %vm873, %v867, 0
        %v878 = vsel %vm873, %v870, 0
        %880 = vmatprep.subr.mxu0 0.0
        %881 = vmatpush1.xpose.msra.mxu0 %v878
        %882 = vmatprep.subr.mxu0 0.0
        %883 = vmatpush1.xpose.msra.mxu0 0.0
        %884 = vmatprep.subr.mxu0 0.0
        %885 = vmatpush1.xpose.msra.mxu0 0.0
        %886 = vmatprep.subr.mxu0 0.0
        %887 = vmatpush1.xpose.msra.mxu0 0.0
        %888 = vmatprep.subr.mxu0 0.0
        %889 = vmatpush1.xpose.msra.mxu0 0.0
        %890 = vmatprep.subr.mxu0 0.0
        %891 = vmatpush1.xpose.msra.mxu0 0.0
        %892 = vmatprep.subr.mxu0 0.0
        %893 = vmatpush1.xpose.msra.mxu0 0.0
        %894 = vmatprep.subr.mxu0 0.0
        %895 = vmatpush1.xpose.msra.mxu0 0.0
        %896 = vmatprep.subr.mxu0 0.0
        %897 = vmatpush1.xpose.msra.mxu0 0.0
        %898 = vmatprep.subr.mxu0 0.0
        %899 = vmatpush1.xpose.msra.mxu0 0.0
        %900 = vmatprep.subr.mxu0 0.0
        %901 = vmatpush1.xpose.msra.mxu0 0.0
        %902 = vmatprep.subr.mxu0 0.0
        %903 = vmatpush1.xpose.msra.mxu0 0.0
        %904 = vmatprep.subr.mxu0 0.0
        %905 = vmatpush1.xpose.msra.mxu0 0.0
        %906 = vmatprep.subr.mxu0 0.0
        %907 = vmatpush1.xpose.msra.mxu0 0.0
        %908 = vmatprep.subr.mxu0 0.0
        %909 = vmatpush1.xpose.msra.mxu0 0.0
        %910 = vmatprep.subr.mxu0 0.0
        %911 = vmatpush1.xpose.msra.mxu0 0.0
        %912 = vmatprep.subr.mxu0 0.0
        %913 = vmatpush1.xpose.msra.mxu0 0.0
        %914 = vmatprep.subr.mxu0 0.0
        %915 = vmatpush1.xpose.msra.mxu0 0.0
        %916 = vmatprep.subr.mxu0 0.0
        %917 = vmatpush1.xpose.msra.mxu0 0.0
        %918 = vmatprep.subr.mxu0 0.0
        %919 = vmatpush1.xpose.msra.mxu0 0.0
        %920 = vmatprep.subr.mxu0 0.0
        %921 = vmatpush1.xpose.msra.mxu0 0.0
        %922 = vmatprep.subr.mxu0 0.0
        %923 = vmatpush1.xpose.msra.mxu0 0.0
        %924 = vmatprep.subr.mxu0 0.0
        %925 = vmatpush1.xpose.msra.mxu0 0.0
        %926 = vmatprep.subr.mxu0 0.0
        %927 = vmatpush1.xpose.msra.mxu0 0.0
        %928 = vmatprep.subr.mxu0 0.0
        %929 = vmatpush1.xpose.msra.mxu0 0.0
        %930 = vmatprep.subr.mxu0 0.0
        %931 = vmatpush1.xpose.msra.mxu0 0.0
        %932 = vmatprep.subr.mxu0 0.0
        %933 = vmatpush1.xpose.msra.mxu0 0.0
        %934 = vmatprep.subr.mxu0 0.0
        %935 = vmatpush1.xpose.msra.mxu0 0.0
        %936 = vmatprep.subr.mxu0 0.0
        %937 = vmatpush1.xpose.msra.mxu0 0.0
        %938 = vmatprep.subr.mxu0 0.0
        %939 = vmatpush1.xpose.msra.mxu0 0.0
        %940 = vmatprep.subr.mxu0 0.0
        %941 = vmatpush1.xpose.msra.mxu0 0.0
        %942 = vmatprep.subr.mxu0 0.0
        %943 = vmatpush1.xpose.msra.mxu0 0.0
        %944 = vmatprep.mubr.f32.mxu0 0.0
        %945 = vmatmul.mubr.f32.gmra.mrb[0].mxu0 %v875
        %v946 = vpop.f32.mrb[0].mxu0
        %v947 = vadd.f32 0.0, %v946
        %v948 = vpop.f32.mrb[0].mxu0
        %949 = vdwg.mxu0
        %vm950 = vnez %v872
        %v951 = vsel %vm950, 16843009, 0
        %v952 = vunpack.c.0.s8 %v951
        %vm953 = vcmp.ne.s32.totalorder %v952, 0
        %v954 = vsel %vm953, -1e+09, %v947
        %v955 = vsel %vm873, %v954, -inf
        %956 = vmax.xlane.f32.xlu0 %v955
        %v957 = vpop.xlane.xlu0 %956
        %v958 = vsub.f32 %v954, %v957
        %v959 = vmul.f32 %v958, 1.442695
        %v960 = vpow.pop %v959
        %v961 = vsel %vm873, %v960, 0.0
        %962 = vadd.xlane.f32.xlu0 %v961
        %v963 = vpop.xlane.xlu0 %962
        %v964 = vrcp.pop %v963
        %v965 = vmul.f32 %v960, %v964
        %966 = vst.msk [vmem:[%s625] sm:$0xff] %vm873, %v965
        %v968 = vsel %vm873, %v965, 0
        %970 = vmatprep.subr.mxu0 0.0
        %971 = vmatpush1.msra.mxu0 %v871
        %972 = vmatprep.subr.mxu0 0.0
        %973 = vmatpush1.msra.mxu0 0.0
        %974 = vmatprep.subr.mxu0 0.0
        %975 = vmatpush1.msra.mxu0 0.0
        %976 = vmatprep.subr.mxu0 0.0
        %977 = vmatpush1.msra.mxu0 0.0
        %978 = vmatprep.subr.mxu0 0.0
        %979 = vmatpush1.msra.mxu0 0.0
        %980 = vmatprep.subr.mxu0 0.0
        %981 = vmatpush1.msra.mxu0 0.0
        %982 = vmatprep.subr.mxu0 0.0
        %983 = vmatpush1.msra.mxu0 0.0
        %984 = vmatprep.subr.mxu0 0.0
        %985 = vmatpush1.msra.mxu0 0.0
        %986 = vmatprep.subr.mxu0 0.0
        %987 = vmatpush1.msra.mxu0 0.0
        %988 = vmatprep.subr.mxu0 0.0
        %989 = vmatpush1.msra.mxu0 0.0
        %990 = vmatprep.subr.mxu0 0.0
        %991 = vmatpush1.msra.mxu0 0.0
        %992 = vmatprep.subr.mxu0 0.0
        %993 = vmatpush1.msra.mxu0 0.0
        %994 = vmatprep.subr.mxu0 0.0
        %995 = vmatpush1.msra.mxu0 0.0
        %996 = vmatprep.subr.mxu0 0.0
        %997 = vmatpush1.msra.mxu0 0.0
        %998 = vmatprep.subr.mxu0 0.0
        %999 = vmatpush1.msra.mxu0 0.0
        %1000 = vmatprep.subr.mxu0 0.0
        %1001 = vmatpush1.msra.mxu0 0.0
        %1002 = vmatprep.subr.mxu0 0.0
        %1003 = vmatpush1.msra.mxu0 0.0
        %1004 = vmatprep.subr.mxu0 0.0
        %1005 = vmatpush1.msra.mxu0 0.0
        %1006 = vmatprep.subr.mxu0 0.0
        %1007 = vmatpush1.msra.mxu0 0.0
        %1008 = vmatprep.subr.mxu0 0.0
        %1009 = vmatpush1.msra.mxu0 0.0
        %1010 = vmatprep.subr.mxu0 0.0
        %1011 = vmatpush1.msra.mxu0 0.0
        %1012 = vmatprep.subr.mxu0 0.0
        %1013 = vmatpush1.msra.mxu0 0.0
        %1014 = vmatprep.subr.mxu0 0.0
        %1015 = vmatpush1.msra.mxu0 0.0
        %1016 = vmatprep.subr.mxu0 0.0
        %1017 = vmatpush1.msra.mxu0 0.0
        %1018 = vmatprep.subr.mxu0 0.0
        %1019 = vmatpush1.msra.mxu0 0.0
        %1020 = vmatprep.subr.mxu0 0.0
        %1021 = vmatpush1.msra.mxu0 0.0
        %1022 = vmatprep.subr.mxu0 0.0
        %1023 = vmatpush1.msra.mxu0 0.0
        %1024 = vmatprep.subr.mxu0 0.0
        %1025 = vmatpush1.msra.mxu0 0.0
        %1026 = vmatprep.subr.mxu0 0.0
        %1027 = vmatpush1.msra.mxu0 0.0
        %1028 = vmatprep.subr.mxu0 0.0
        %1029 = vmatpush1.msra.mxu0 0.0
        %1030 = vmatprep.subr.mxu0 0.0
        %1031 = vmatpush1.msra.mxu0 0.0
        %1032 = vmatprep.subr.mxu0 0.0
        %1033 = vmatpush1.msra.mxu0 0.0
        %1034 = vmatprep.mubr.f32.mxu0 0.0
        %1035 = vmatmul.mubr.f32.gmra.mrb[0].mxu0 %v968
        %v1036 = vpop.f32.mrb[0].mxu0
        %v1037 = vadd.f32 0.0, %v1036
        %v1038 = vpop.f32.mrb[0].mxu0
        %1039 = vdwg.mxu0
        %1040 = vrot.lane.b32.xlu0 %v867, 120
        %v1041 = vpop.permute.xlu0 %1040
        %1042 = vrot.lane.b32.xlu0 %v870, 120
        %v1043 = vpop.permute.xlu0 %1042
        %v1044 = vsel %vm873, %v1041, 0
        %v1046 = vsel %vm873, %v1043, 0
        %1048 = vmatprep.subr.mxu0 0.0
        %1049 = vmatpush1.xpose.msra.mxu0 %v1046
        %1050 = vmatprep.subr.mxu0 0.0
        %1051 = vmatpush1.xpose.msra.mxu0 0.0
        %1052 = vmatprep.subr.mxu0 0.0
        %1053 = vmatpush1.xpose.msra.mxu0 0.0
        %1054 = vmatprep.subr.mxu0 0.0
        %1055 = vmatpush1.xpose.msra.mxu0 0.0
        %1056 = vmatprep.subr.mxu0 0.0
        %1057 = vmatpush1.xpose.msra.mxu0 0.0
        %1058 = vmatprep.subr.mxu0 0.0
        %1059 = vmatpush1.xpose.msra.mxu0 0.0
        %1060 = vmatprep.subr.mxu0 0.0
        %1061 = vmatpush1.xpose.msra.mxu0 0.0
        %1062 = vmatprep.subr.mxu0 0.0
        %1063 = vmatpush1.xpose.msra.mxu0 0.0
        %1064 = vmatprep.subr.mxu0 0.0
        %1065 = vmatpush1.xpose.msra.mxu0 0.0
        %1066 = vmatprep.subr.mxu0 0.0
        %1067 = vmatpush1.xpose.msra.mxu0 0.0
        %1068 = vmatprep.subr.mxu0 0.0
        %1069 = vmatpush1.xpose.msra.mxu0 0.0
        %1070 = vmatprep.subr.mxu0 0.0
        %1071 = vmatpush1.xpose.msra.mxu0 0.0
        %1072 = vmatprep.subr.mxu0 0.0
        %1073 = vmatpush1.xpose.msra.mxu0 0.0
        %1074 = vmatprep.subr.mxu0 0.0
        %1075 = vmatpush1.xpose.msra.mxu0 0.0
        %1076 = vmatprep.subr.mxu0 0.0
        %1077 = vmatpush1.xpose.msra.mxu0 0.0
        %1078 = vmatprep.subr.mxu0 0.0
        %1079 = vmatpush1.xpose.msra.mxu0 0.0
        %1080 = vmatprep.subr.mxu0 0.0
        %1081 = vmatpush1.xpose.msra.mxu0 0.0
        %1082 = vmatprep.subr.mxu0 0.0
        %1083 = vmatpush1.xpose.msra.mxu0 0.0
        %1084 = vmatprep.subr.mxu0 0.0
        %1085 = vmatpush1.xpose.msra.mxu0 0.0
        %1086 = vmatprep.subr.mxu0 0.0
        %1087 = vmatpush1.xpose.msra.mxu0 0.0
        %1088 = vmatprep.subr.mxu0 0.0
        %1089 = vmatpush1.xpose.msra.mxu0 0.0
        %1090 = vmatprep.subr.mxu0 0.0
        %1091 = vmatpush1.xpose.msra.mxu0 0.0
        %1092 = vmatprep.subr.mxu0 0.0
        %1093 = vmatpush1.xpose.msra.mxu0 0.0
        %1094 = vmatprep.subr.mxu0 0.0
        %1095 = vmatpush1.xpose.msra.mxu0 0.0
        %1096 = vmatprep.subr.mxu0 0.0
        %1097 = vmatpush1.xpose.msra.mxu0 0.0
        %1098 = vmatprep.subr.mxu0 0.0
        %1099 = vmatpush1.xpose.msra.mxu0 0.0
        %1100 = vmatprep.subr.mxu0 0.0
        %1101 = vmatpush1.xpose.msra.mxu0 0.0
        %1102 = vmatprep.subr.mxu0 0.0
        %1103 = vmatpush1.xpose.msra.mxu0 0.0
        %1104 = vmatprep.subr.mxu0 0.0
        %1105 = vmatpush1.xpose.msra.mxu0 0.0
        %1106 = vmatprep.subr.mxu0 0.0
        %1107 = vmatpush1.xpose.msra.mxu0 0.0
        %1108 = vmatprep.subr.mxu0 0.0
        %1109 = vmatpush1.xpose.msra.mxu0 0.0
        %1110 = vmatprep.subr.mxu0 0.0
        %1111 = vmatpush1.xpose.msra.mxu0 0.0
        %1112 = vmatprep.mubr.f32.mxu0 0.0
        %1113 = vmatmul.mubr.f32.gmra.mrb[0].mxu0 %v1044
        %v1114 = vpop.f32.mrb[0].mxu0
        %v1115 = vadd.f32 0.0, %v1114
        %v1116 = vpop.f32.mrb[0].mxu0
        %1117 = vdwg.mxu0
        %v1118 = vsel %vm953, -1e+09, %v1115
        %v1119 = vsel %vm873, %v1118, -inf
        %1120 = vmax.xlane.f32.xlu0 %v1119
        %v1121 = vpop.xlane.xlu0 %1120
        %v1122 = vsub.f32 %v1118, %v1121
        %v1123 = vmul.f32 %v1122, 1.442695
        %v1124 = vpow.pop %v1123
        %v1125 = vsel %vm873, %v1124, 0.0
        %1126 = vadd.xlane.f32.xlu0 %v1125
        %v1127 = vpop.xlane.xlu0 %1126
        %v1128 = vrcp.pop %v1127
        %v1129 = vmul.f32 %v1124, %v1128
        %s1130 = scalar_lea.vmem %s625, 8 [#allocation22]
        %1131 = vst.msk [vmem:[%s1130] sm:$0xff] %vm873, %v1129
        %1133 = vrot.lane.b32.xlu0 %v871, 120
        %v1134 = vpop.permute.xlu0 %1133
        %v1137 = vsel %vm873, %v1129, 0
        %1139 = vmatprep.subr.mxu0 0.0
        %1140 = vmatpush1.msra.mxu0 %v1134
        %1141 = vmatprep.subr.mxu0 0.0
        %1142 = vmatpush1.msra.mxu0 0.0
        %1143 = vmatprep.subr.mxu0 0.0
        %1144 = vmatpush1.msra.mxu0 0.0
        %1145 = vmatprep.subr.mxu0 0.0
        %1146 = vmatpush1.msra.mxu0 0.0
        %1147 = vmatprep.subr.mxu0 0.0
        %1148 = vmatpush1.msra.mxu0 0.0
        %1149 = vmatprep.subr.mxu0 0.0
        %1150 = vmatpush1.msra.mxu0 0.0
        %1151 = vmatprep.subr.mxu0 0.0
        %1152 = vmatpush1.msra.mxu0 0.0
        %1153 = vmatprep.subr.mxu0 0.0
        %1154 = vmatpush1.msra.mxu0 0.0
        %1155 = vmatprep.subr.mxu0 0.0
        %1156 = vmatpush1.msra.mxu0 0.0
        %1157 = vmatprep.subr.mxu0 0.0
        %1158 = vmatpush1.msra.mxu0 0.0
        %1159 = vmatprep.subr.mxu0 0.0
        %1160 = vmatpush1.msra.mxu0 0.0
        %1161 = vmatprep.subr.mxu0 0.0
        %1162 = vmatpush1.msra.mxu0 0.0
        %1163 = vmatprep.subr.mxu0 0.0
        %1164 = vmatpush1.msra.mxu0 0.0
        %1165 = vmatprep.subr.mxu0 0.0
        %1166 = vmatpush1.msra.mxu0 0.0
        %1167 = vmatprep.subr.mxu0 0.0
        %1168 = vmatpush1.msra.mxu0 0.0
        %1169 = vmatprep.subr.mxu0 0.0
        %1170 = vmatpush1.msra.mxu0 0.0
        %1171 = vmatprep.subr.mxu0 0.0
        %1172 = vmatpush1.msra.mxu0 0.0
        %1173 = vmatprep.subr.mxu0 0.0
        %1174 = vmatpush1.msra.mxu0 0.0
        %1175 = vmatprep.subr.mxu0 0.0
        %1176 = vmatpush1.msra.mxu0 0.0
        %1177 = vmatprep.subr.mxu0 0.0
        %1178 = vmatpush1.msra.mxu0 0.0
        %1179 = vmatprep.subr.mxu0 0.0
        %1180 = vmatpush1.msra.mxu0 0.0
        %1181 = vmatprep.subr.mxu0 0.0
        %1182 = vmatpush1.msra.mxu0 0.0
        %1183 = vmatprep.subr.mxu0 0.0
        %1184 = vmatpush1.msra.mxu0 0.0
        %1185 = vmatprep.subr.mxu0 0.0
        %1186 = vmatpush1.msra.mxu0 0.0
        %1187 = vmatprep.subr.mxu0 0.0
        %1188 = vmatpush1.msra.mxu0 0.0
        %1189 = vmatprep.subr.mxu0 0.0
        %1190 = vmatpush1.msra.mxu0 0.0
        %1191 = vmatprep.subr.mxu0 0.0
        %1192 = vmatpush1.msra.mxu0 0.0
        %1193 = vmatprep.subr.mxu0 0.0
        %1194 = vmatpush1.msra.mxu0 0.0
        %1195 = vmatprep.subr.mxu0 0.0
        %1196 = vmatpush1.msra.mxu0 0.0
        %1197 = vmatprep.subr.mxu0 0.0
        %1198 = vmatpush1.msra.mxu0 0.0
        %1199 = vmatprep.subr.mxu0 0.0
        %1200 = vmatpush1.msra.mxu0 0.0
        %1201 = vmatprep.subr.mxu0 0.0
        %1202 = vmatpush1.msra.mxu0 0.0
        %1203 = vmatprep.mubr.f32.mxu0 0.0
        %1204 = vmatmul.mubr.f32.gmra.mrb[0].mxu0 %v1137
        %v1205 = vpop.f32.mrb[0].mxu0
        %v1206 = vadd.f32 0.0, %v1205
        %v1207 = vpop.f32.mrb[0].mxu0
        %1208 = vdwg.mxu0
        %1209 = vrot.lane.b32.xlu0 %v867, 112
        %v1210 = vpop.permute.xlu0 %1209
        %1211 = vrot.lane.b32.xlu0 %v870, 112
        %v1212 = vpop.permute.xlu0 %1211
        %v1213 = vsel %vm873, %v1210, 0
        %v1215 = vsel %vm873, %v1212, 0
        %1217 = vmatprep.subr.mxu0 0.0
        %1218 = vmatpush1.xpose.msra.mxu0 %v1215
        %1219 = vmatprep.subr.mxu0 0.0
        %1220 = vmatpush1.xpose.msra.mxu0 0.0
        %1221 = vmatprep.subr.mxu0 0.0
        %1222 = vmatpush1.xpose.msra.mxu0 0.0
        %1223 = vmatprep.subr.mxu0 0.0
        %1224 = vmatpush1.xpose.msra.mxu0 0.0
        %1225 = vmatprep.subr.mxu0 0.0
        %1226 = vmatpush1.xpose.msra.mxu0 0.0
        %1227 = vmatprep.subr.mxu0 0.0
        %1228 = vmatpush1.xpose.msra.mxu0 0.0
        %1229 = vmatprep.subr.mxu0 0.0
        %1230 = vmatpush1.xpose.msra.mxu0 0.0
        %1231 = vmatprep.subr.mxu0 0.0
        %1232 = vmatpush1.xpose.msra.mxu0 0.0
        %1233 = vmatprep.subr.mxu0 0.0
        %1234 = vmatpush1.xpose.msra.mxu0 0.0
        %1235 = vmatprep.subr.mxu0 0.0
        %1236 = vmatpush1.xpose.msra.mxu0 0.0
        %1237 = vmatprep.subr.mxu0 0.0
        %1238 = vmatpush1.xpose.msra.mxu0 0.0
        %1239 = vmatprep.subr.mxu0 0.0
        %1240 = vmatpush1.xpose.msra.mxu0 0.0
        %1241 = vmatprep.subr.mxu0 0.0
        %1242 = vmatpush1.xpose.msra.mxu0 0.0
        %1243 = vmatprep.subr.mxu0 0.0
        %1244 = vmatpush1.xpose.msra.mxu0 0.0
        %1245 = vmatprep.subr.mxu0 0.0
        %1246 = vmatpush1.xpose.msra.mxu0 0.0
        %1247 = vmatprep.subr.mxu0 0.0
        %1248 = vmatpush1.xpose.msra.mxu0 0.0
        %1249 = vmatprep.subr.mxu0 0.0
        %1250 = vmatpush1.xpose.msra.mxu0 0.0
        %1251 = vmatprep.subr.mxu0 0.0
        %1252 = vmatpush1.xpose.msra.mxu0 0.0
        %1253 = vmatprep.subr.mxu0 0.0
        %1254 = vmatpush1.xpose.msra.mxu0 0.0
        %1255 = vmatprep.subr.mxu0 0.0
        %1256 = vmatpush1.xpose.msra.mxu0 0.0
        %1257 = vmatprep.subr.mxu0 0.0
        %1258 = vmatpush1.xpose.msra.mxu0 0.0
        %1259 = vmatprep.subr.mxu0 0.0
        %1260 = vmatpush1.xpose.msra.mxu0 0.0
        %1261 = vmatprep.subr.mxu0 0.0
        %1262 = vmatpush1.xpose.msra.mxu0 0.0
        %1263 = vmatprep.subr.mxu0 0.0
        %1264 = vmatpush1.xpose.msra.mxu0 0.0
        %1265 = vmatprep.subr.mxu0 0.0
        %1266 = vmatpush1.xpose.msra.mxu0 0.0
        %1267 = vmatprep.subr.mxu0 0.0
        %1268 = vmatpush1.xpose.msra.mxu0 0.0
        %1269 = vmatprep.subr.mxu0 0.0
        %1270 = vmatpush1.xpose.msra.mxu0 0.0
        %1271 = vmatprep.subr.mxu0 0.0
        %1272 = vmatpush1.xpose.msra.mxu0 0.0
        %1273 = vmatprep.subr.mxu0 0.0
        %1274 = vmatpush1.xpose.msra.mxu0 0.0
        %1275 = vmatprep.subr.mxu0 0.0
        %1276 = vmatpush1.xpose.msra.mxu0 0.0
        %1277 = vmatprep.subr.mxu0 0.0
        %1278 = vmatpush1.xpose.msra.mxu0 0.0
        %1279 = vmatprep.subr.mxu0 0.0
        %1280 = vmatpush1.xpose.msra.mxu0 0.0
        %1281 = vmatprep.mubr.f32.mxu0 0.0
        %1282 = vmatmul.mubr.f32.gmra.mrb[0].mxu0 %v1213
        %v1283 = vpop.f32.mrb[0].mxu0
        %v1284 = vadd.f32 0.0, %v1283
        %v1285 = vpop.f32.mrb[0].mxu0
        %1286 = vdwg.mxu0
        %v1287 = vsel %vm953, -1e+09, %v1284
        %v1288 = vsel %vm873, %v1287, -inf
        %1289 = vmax.xlane.f32.xlu0 %v1288
        %v1290 = vpop.xlane.xlu0 %1289
        %v1291 = vsub.f32 %v1287, %v1290
        %v1292 = vmul.f32 %v1291, 1.442695
        %v1293 = vpow.pop %v1292
        %v1294 = vsel %vm873, %v1293, 0.0
        %1295 = vadd.xlane.f32.xlu0 %v1294
        %v1296 = vpop.xlane.xlu0 %1295
        %v1297 = vrcp.pop %v1296
        %v1298 = vmul.f32 %v1293, %v1297
        %s1299 = scalar_lea.vmem %s625, 16 [#allocation22]
        %1300 = vst.msk [vmem:[%s1299] sm:$0xff] %vm873, %v1298
        %1301 = vrot.lane.b32.xlu0 %v871, 112
        %v1302 = vpop.permute.xlu0 %1301
        %v1305 = vsel %vm873, %v1298, 0
        %1307 = vmatprep.subr.mxu0 0.0
        %1308 = vmatpush1.msra.mxu0 %v1302
        %1309 = vmatprep.subr.mxu0 0.0
        %1310 = vmatpush1.msra.mxu0 0.0
        %1311 = vmatprep.subr.mxu0 0.0
        %1312 = vmatpush1.msra.mxu0 0.0
        %1313 = vmatprep.subr.mxu0 0.0
        %1314 = vmatpush1.msra.mxu0 0.0
        %1315 = vmatprep.subr.mxu0 0.0
        %1316 = vmatpush1.msra.mxu0 0.0
        %1317 = vmatprep.subr.mxu0 0.0
        %1318 = vmatpush1.msra.mxu0 0.0
        %1319 = vmatprep.subr.mxu0 0.0
        %1320 = vmatpush1.msra.mxu0 0.0
        %1321 = vmatprep.subr.mxu0 0.0
        %1322 = vmatpush1.msra.mxu0 0.0
        %1323 = vmatprep.subr.mxu0 0.0
        %1324 = vmatpush1.msra.mxu0 0.0
        %1325 = vmatprep.subr.mxu0 0.0
        %1326 = vmatpush1.msra.mxu0 0.0
        %1327 = vmatprep.subr.mxu0 0.0
        %1328 = vmatpush1.msra.mxu0 0.0
        %1329 = vmatprep.subr.mxu0 0.0
        %1330 = vmatpush1.msra.mxu0 0.0
        %1331 = vmatprep.subr.mxu0 0.0
        %1332 = vmatpush1.msra.mxu0 0.0
        %1333 = vmatprep.subr.mxu0 0.0
        %1334 = vmatpush1.msra.mxu0 0.0
        %1335 = vmatprep.subr.mxu0 0.0
        %1336 = vmatpush1.msra.mxu0 0.0
        %1337 = vmatprep.subr.mxu0 0.0
        %1338 = vmatpush1.msra.mxu0 0.0
        %1339 = vmatprep.subr.mxu0 0.0
        %1340 = vmatpush1.msra.mxu0 0.0
        %1341 = vmatprep.subr.mxu0 0.0
        %1342 = vmatpush1.msra.mxu0 0.0
        %1343 = vmatprep.subr.mxu0 0.0
        %1344 = vmatpush1.msra.mxu0 0.0
        %1345 = vmatprep.subr.mxu0 0.0
        %1346 = vmatpush1.msra.mxu0 0.0
        %1347 = vmatprep.subr.mxu0 0.0
        %1348 = vmatpush1.msra.mxu0 0.0
        %1349 = vmatprep.subr.mxu0 0.0
        %1350 = vmatpush1.msra.mxu0 0.0
        %1351 = vmatprep.subr.mxu0 0.0
        %1352 = vmatpush1.msra.mxu0 0.0
        %1353 = vmatprep.subr.mxu0 0.0
        %1354 = vmatpush1.msra.mxu0 0.0
        %1355 = vmatprep.subr.mxu0 0.0
        %1356 = vmatpush1.msra.mxu0 0.0
        %1357 = vmatprep.subr.mxu0 0.0
        %1358 = vmatpush1.msra.mxu0 0.0
        %1359 = vmatprep.subr.mxu0 0.0
        %1360 = vmatpush1.msra.mxu0 0.0
        %1361 = vmatprep.subr.mxu0 0.0
        %1362 = vmatpush1.msra.mxu0 0.0
        %1363 = vmatprep.subr.mxu0 0.0
        %1364 = vmatpush1.msra.mxu0 0.0
        %1365 = vmatprep.subr.mxu0 0.0
        %1366 = vmatpush1.msra.mxu0 0.0
        %1367 = vmatprep.subr.mxu0 0.0
        %1368 = vmatpush1.msra.mxu0 0.0
        %1369 = vmatprep.subr.mxu0 0.0
        %1370 = vmatpush1.msra.mxu0 0.0
        %1371 = vmatprep.mubr.f32.mxu0 0.0
        %1372 = vmatmul.mubr.f32.gmra.mrb[0].mxu0 %v1305
        %v1373 = vpop.f32.mrb[0].mxu0
        %v1374 = vadd.f32 0.0, %v1373
        %v1375 = vpop.f32.mrb[0].mxu0
        %1376 = vdwg.mxu0
        %1377 = vrot.lane.b32.xlu0 %v867, 104
        %v1378 = vpop.permute.xlu0 %1377
        %1379 = vrot.lane.b32.xlu0 %v870, 104
        %v1380 = vpop.permute.xlu0 %1379
        %v1381 = vsel %vm873, %v1378, 0
        %v1383 = vsel %vm873, %v1380, 0
        %1385 = vmatprep.subr.mxu0 0.0
        %1386 = vmatpush1.xpose.msra.mxu0 %v1383
        %1387 = vmatprep.subr.mxu0 0.0
        %1388 = vmatpush1.xpose.msra.mxu0 0.0
        %1389 = vmatprep.subr.mxu0 0.0
        %1390 = vmatpush1.xpose.msra.mxu0 0.0
        %1391 = vmatprep.subr.mxu0 0.0
        %1392 = vmatpush1.xpose.msra.mxu0 0.0
        %1393 = vmatprep.subr.mxu0 0.0
        %1394 = vmatpush1.xpose.msra.mxu0 0.0
        %1395 = vmatprep.subr.mxu0 0.0
        %1396 = vmatpush1.xpose.msra.mxu0 0.0
        %1397 = vmatprep.subr.mxu0 0.0
        %1398 = vmatpush1.xpose.msra.mxu0 0.0
        %1399 = vmatprep.subr.mxu0 0.0
        %1400 = vmatpush1.xpose.msra.mxu0 0.0
        %1401 = vmatprep.subr.mxu0 0.0
        %1402 = vmatpush1.xpose.msra.mxu0 0.0
        %1403 = vmatprep.subr.mxu0 0.0
        %1404 = vmatpush1.xpose.msra.mxu0 0.0
        %1405 = vmatprep.subr.mxu0 0.0
        %1406 = vmatpush1.xpose.msra.mxu0 0.0
        %1407 = vmatprep.subr.mxu0 0.0
        %1408 = vmatpush1.xpose.msra.mxu0 0.0
        %1409 = vmatprep.subr.mxu0 0.0
        %1410 = vmatpush1.xpose.msra.mxu0 0.0
        %1411 = vmatprep.subr.mxu0 0.0
        %1412 = vmatpush1.xpose.msra.mxu0 0.0
        %1413 = vmatprep.subr.mxu0 0.0
        %1414 = vmatpush1.xpose.msra.mxu0 0.0
        %1415 = vmatprep.subr.mxu0 0.0
        %1416 = vmatpush1.xpose.msra.mxu0 0.0
        %1417 = vmatprep.subr.mxu0 0.0
        %1418 = vmatpush1.xpose.msra.mxu0 0.0
        %1419 = vmatprep.subr.mxu0 0.0
        %1420 = vmatpush1.xpose.msra.mxu0 0.0
        %1421 = vmatprep.subr.mxu0 0.0
        %1422 = vmatpush1.xpose.msra.mxu0 0.0
        %1423 = vmatprep.subr.mxu0 0.0
        %1424 = vmatpush1.xpose.msra.mxu0 0.0
        %1425 = vmatprep.subr.mxu0 0.0
        %1426 = vmatpush1.xpose.msra.mxu0 0.0
        %1427 = vmatprep.subr.mxu0 0.0
        %1428 = vmatpush1.xpose.msra.mxu0 0.0
        %1429 = vmatprep.subr.mxu0 0.0
        %1430 = vmatpush1.xpose.msra.mxu0 0.0
        %1431 = vmatprep.subr.mxu0 0.0
        %1432 = vmatpush1.xpose.msra.mxu0 0.0
        %1433 = vmatprep.subr.mxu0 0.0
        %1434 = vmatpush1.xpose.msra.mxu0 0.0
        %1435 = vmatprep.subr.mxu0 0.0
        %1436 = vmatpush1.xpose.msra.mxu0 0.0
        %1437 = vmatprep.subr.mxu0 0.0
        %1438 = vmatpush1.xpose.msra.mxu0 0.0
        %1439 = vmatprep.subr.mxu0 0.0
        %1440 = vmatpush1.xpose.msra.mxu0 0.0
        %1441 = vmatprep.subr.mxu0 0.0
        %1442 = vmatpush1.xpose.msra.mxu0 0.0
        %1443 = vmatprep.subr.mxu0 0.0
        %1444 = vmatpush1.xpose.msra.mxu0 0.0
        %1445 = vmatprep.subr.mxu0 0.0
        %1446 = vmatpush1.xpose.msra.mxu0 0.0
        %1447 = vmatprep.subr.mxu0 0.0
        %1448 = vmatpush1.xpose.msra.mxu0 0.0
        %1449 = vmatprep.mubr.f32.mxu0 0.0
        %1450 = vmatmul.mubr.f32.gmra.mrb[0].mxu0 %v1381
        %v1451 = vpop.f32.mrb[0].mxu0
        %v1452 = vadd.f32 0.0, %v1451
        %v1453 = vpop.f32.mrb[0].mxu0
        %1454 = vdwg.mxu0
        %v1455 = vsel %vm953, -1e+09, %v1452
        %v1456 = vsel %vm873, %v1455, -inf
        %1457 = vmax.xlane.f32.xlu0 %v1456
        %v1458 = vpop.xlane.xlu0 %1457
        %v1459 = vsub.f32 %v1455, %v1458
        %v1460 = vmul.f32 %v1459, 1.442695
        %v1461 = vpow.pop %v1460
        %v1462 = vsel %vm873, %v1461, 0.0
        %1463 = vadd.xlane.f32.xlu0 %v1462
        %v1464 = vpop.xlane.xlu0 %1463
        %v1465 = vrcp.pop %v1464
        %v1466 = vmul.f32 %v1461, %v1465
        %s1467 = scalar_lea.vmem %s625, 24 [#allocation22]
        %1468 = vst.msk [vmem:[%s1467] sm:$0xff] %vm873, %v1466
        %1469 = vrot.lane.b32.xlu0 %v871, 104
        %v1470 = vpop.permute.xlu0 %1469
        %v1473 = vsel %vm873, %v1466, 0
        %1475 = vmatprep.subr.mxu0 0.0
        %1476 = vmatpush1.msra.mxu0 %v1470
        %1477 = vmatprep.subr.mxu0 0.0
        %1478 = vmatpush1.msra.mxu0 0.0
        %1479 = vmatprep.subr.mxu0 0.0
        %1480 = vmatpush1.msra.mxu0 0.0
        %1481 = vmatprep.subr.mxu0 0.0
        %1482 = vmatpush1.msra.mxu0 0.0
        %1483 = vmatprep.subr.mxu0 0.0
        %1484 = vmatpush1.msra.mxu0 0.0
        %1485 = vmatprep.subr.mxu0 0.0
        %1486 = vmatpush1.msra.mxu0 0.0
        %1487 = vmatprep.subr.mxu0 0.0
        %1488 = vmatpush1.msra.mxu0 0.0
        %1489 = vmatprep.subr.mxu0 0.0
        %1490 = vmatpush1.msra.mxu0 0.0
        %1491 = vmatprep.subr.mxu0 0.0
        %1492 = vmatpush1.msra.mxu0 0.0
        %1493 = vmatprep.subr.mxu0 0.0
        %1494 = vmatpush1.msra.mxu0 0.0
        %1495 = vmatprep.subr.mxu0 0.0
        %1496 = vmatpush1.msra.mxu0 0.0
        %1497 = vmatprep.subr.mxu0 0.0
        %1498 = vmatpush1.msra.mxu0 0.0
        %1499 = vmatprep.subr.mxu0 0.0
        %1500 = vmatpush1.msra.mxu0 0.0
        %1501 = vmatprep.subr.mxu0 0.0
        %1502 = vmatpush1.msra.mxu0 0.0
        %1503 = vmatprep.subr.mxu0 0.0
        %1504 = vmatpush1.msra.mxu0 0.0
        %1505 = vmatprep.subr.mxu0 0.0
        %1506 = vmatpush1.msra.mxu0 0.0
        %1507 = vmatprep.subr.mxu0 0.0
        %1508 = vmatpush1.msra.mxu0 0.0
        %1509 = vmatprep.subr.mxu0 0.0
        %1510 = vmatpush1.msra.mxu0 0.0
        %1511 = vmatprep.subr.mxu0 0.0
        %1512 = vmatpush1.msra.mxu0 0.0
        %1513 = vmatprep.subr.mxu0 0.0
        %1514 = vmatpush1.msra.mxu0 0.0
        %1515 = vmatprep.subr.mxu0 0.0
        %1516 = vmatpush1.msra.mxu0 0.0
        %1517 = vmatprep.subr.mxu0 0.0
        %1518 = vmatpush1.msra.mxu0 0.0
        %1519 = vmatprep.subr.mxu0 0.0
        %1520 = vmatpush1.msra.mxu0 0.0
        %1521 = vmatprep.subr.mxu0 0.0
        %1522 = vmatpush1.msra.mxu0 0.0
        %1523 = vmatprep.subr.mxu0 0.0
        %1524 = vmatpush1.msra.mxu0 0.0
        %1525 = vmatprep.subr.mxu0 0.0
        %1526 = vmatpush1.msra.mxu0 0.0
        %1527 = vmatprep.subr.mxu0 0.0
        %1528 = vmatpush1.msra.mxu0 0.0
        %1529 = vmatprep.subr.mxu0 0.0
        %1530 = vmatpush1.msra.mxu0 0.0
        %1531 = vmatprep.subr.mxu0 0.0
        %1532 = vmatpush1.msra.mxu0 0.0
        %1533 = vmatprep.subr.mxu0 0.0
        %1534 = vmatpush1.msra.mxu0 0.0
        %1535 = vmatprep.subr.mxu0 0.0
        %1536 = vmatpush1.msra.mxu0 0.0
        %1537 = vmatprep.subr.mxu0 0.0
        %1538 = vmatpush1.msra.mxu0 0.0
        %1539 = vmatprep.mubr.f32.mxu0 0.0
        %1540 = vmatmul.mubr.f32.gmra.mrb[0].mxu0 %v1473
        %v1541 = vpop.f32.mrb[0].mxu0
        %v1542 = vadd.f32 0.0, %v1541
        %v1543 = vpop.f32.mrb[0].mxu0
        %1544 = vdwg.mxu0
        %1546 = vrot.lane.b32.xlu0 %v1206, 8
        %v1547 = vpop.permute.xlu0 %1546
        %1550 = vrot.lane.b32.xlu0 %v1374, 16
        %v1551 = vpop.permute.xlu0 %1550
        %1554 = vrot.lane.b32.xlu0 %v1542, 24
        %v1555 = vpop.permute.xlu0 %1554
        %v1557 = vsel %vm873, %v1037, %v1547
        %vm1558 = vcmask 130048
        %v1559 = vsel %vm1558, %v1557, %v1551
        %vm1560 = vcmask 195584
        %v1561 = vsel %vm1560, %v1559, %v1555
        %v1562 = vld [vmem:[#allocation16] sm:$0xff]
        %v1563 = vld [vmem:[#allocation16 + $0x8] sm:$0xff]
        %v1564 = vld [vmem:[#allocation16 + $0x10] sm:$0xff]
        %v1565 = vld [vmem:[#allocation16 + $0x18] sm:$0xff]
        %v1566 = vld [vmem:[%s516] sm:$0xff]
        %v1568 = vsel %vm796, %v1561, 0
        %1570 = vmatprep.subr.mxu0 0.0
        %1571 = vmatpush1.msra.mxu0 %v1562
        %1572 = vmatprep.subr.mxu0 0.0
        %1573 = vmatpush1.msra.mxu0 %v1563
        %1574 = vmatprep.subr.mxu0 0.0
        %1575 = vmatpush1.msra.mxu0 %v1564
        %1576 = vmatprep.subr.mxu0 0.0
        %1577 = vmatpush1.msra.mxu0 %v1565
        %1578 = vmatprep.subr.mxu0 0.0
        %1579 = vmatpush1.msra.mxu0 0.0
        %1580 = vmatprep.subr.mxu0 0.0
        %1581 = vmatpush1.msra.mxu0 0.0
        %1582 = vmatprep.subr.mxu0 0.0
        %1583 = vmatpush1.msra.mxu0 0.0
        %1584 = vmatprep.subr.mxu0 0.0
        %1585 = vmatpush1.msra.mxu0 0.0
        %1586 = vmatprep.subr.mxu0 0.0
        %1587 = vmatpush1.msra.mxu0 0.0
        %1588 = vmatprep.subr.mxu0 0.0
        %1589 = vmatpush1.msra.mxu0 0.0
        %1590 = vmatprep.subr.mxu0 0.0
        %1591 = vmatpush1.msra.mxu0 0.0
        %1592 = vmatprep.subr.mxu0 0.0
        %1593 = vmatpush1.msra.mxu0 0.0
        %1594 = vmatprep.subr.mxu0 0.0
        %1595 = vmatpush1.msra.mxu0 0.0
        %1596 = vmatprep.subr.mxu0 0.0
        %1597 = vmatpush1.msra.mxu0 0.0
        %1598 = vmatprep.subr.mxu0 0.0
        %1599 = vmatpush1.msra.mxu0 0.0
        %1600 = vmatprep.subr.mxu0 0.0
        %1601 = vmatpush1.msra.mxu0 0.0
        %1602 = vmatprep.subr.mxu0 0.0
        %1603 = vmatpush1.msra.mxu0 0.0
        %1604 = vmatprep.subr.mxu0 0.0
        %1605 = vmatpush1.msra.mxu0 0.0
        %1606 = vmatprep.subr.mxu0 0.0
        %1607 = vmatpush1.msra.mxu0 0.0
        %1608 = vmatprep.subr.mxu0 0.0
        %1609 = vmatpush1.msra.mxu0 0.0
        %1610 = vmatprep.subr.mxu0 0.0
        %1611 = vmatpush1.msra.mxu0 0.0
        %1612 = vmatprep.subr.mxu0 0.0
        %1613 = vmatpush1.msra.mxu0 0.0
        %1614 = vmatprep.subr.mxu0 0.0
        %1615 = vmatpush1.msra.mxu0 0.0
        %1616 = vmatprep.subr.mxu0 0.0
        %1617 = vmatpush1.msra.mxu0 0.0
        %1618 = vmatprep.subr.mxu0 0.0
        %1619 = vmatpush1.msra.mxu0 0.0
        %1620 = vmatprep.subr.mxu0 0.0
        %1621 = vmatpush1.msra.mxu0 0.0
        %1622 = vmatprep.subr.mxu0 0.0
        %1623 = vmatpush1.msra.mxu0 0.0
        %1624 = vmatprep.subr.mxu0 0.0
        %1625 = vmatpush1.msra.mxu0 0.0
        %1626 = vmatprep.subr.mxu0 0.0
        %1627 = vmatpush1.msra.mxu0 0.0
        %1628 = vmatprep.subr.mxu0 0.0
        %1629 = vmatpush1.msra.mxu0 0.0
        %1630 = vmatprep.subr.mxu0 0.0
        %1631 = vmatpush1.msra.mxu0 0.0
        %1632 = vmatprep.subr.mxu0 0.0
        %1633 = vmatpush1.msra.mxu0 0.0
        %1634 = vmatprep.mubr.f32.mxu0 0.0
        %1635 = vmatmul.mubr.f32.gmra.mrb[0].mxu0 %v1568
        %v1636 = vpop.f32.mrb[0].mxu0
        %v1637 = vadd.f32 %v1566, %v1636
        %v1638 = vpop.f32.mrb[0].mxu0
        %1639 = vdwg.mxu0
        %v1640 = vsel %vm796, %v1637, 0.0
        %1641 = vadd.xlane.f32.xlu0 %v1640
        %v1642 = vpop.xlane.xlu0 %1641
        %v1643 = vrcp.pop 32.0
        %v1644 = vmul.f32 %v1642, %v1643
        %v1645 = vsub.f32 %v1637, %v1644
        %v1646 = vmul.f32 %v1645, %v1645
        %v1647 = vsel %vm796, %v1646, 0.0
        %1648 = vadd.xlane.f32.xlu0 %v1647
        %v1649 = vpop.xlane.xlu0 %1648
        %v1650 = vmul.f32 %v1649, 0.032258064
        %v1651 = vrsqrt.pop %v1650
        %v1652 = vmul.f32 %v1650, %v1651
        %vm1653 = vcmp.eq.f32.partialorder %v1650, inf
        %v1654 = vsel %vm1653, %v1650, %v1652
        %vm1655 = vcmp.eq.f32.partialorder %v1650, 0.0
        %v1656 = vand.u32 %v1650, 2147483648
        %v1657 = vsel %vm1655, %v1656, %v1654
        %v1658 = vadd.f32 %v1657, 0.001
        %v1659 = vrcp.pop %v1658
        %v1660 = vmul.f32 %v1645, %v1659
        %v1661 = vld [vmem:[#allocation18] sm:$0x1]
        %v1663 = vlaneseq
        %v1664 = vshrl.u32 %v1663, 7
        %v1665 = vsub.s32 0, %v1664
        %v1666 = vrot.slane %v1661, %v1665
        %v1668 = vmul.f32 %v1660, %v1666
        %v1669 = vld [vmem:[#allocation19] sm:$0x1]
        %v1671 = vlaneseq
        %v1672 = vshrl.u32 %v1671, 7
        %v1673 = vsub.s32 0, %v1672
        %v1674 = vrot.slane %v1669, %v1673
        %v1676 = vadd.f32 %v1668, %v1674
        %1677 = vst.msk [vmem:[%s618] sm:$0xff] %vm796, %v1676
        %s1678 = sand.u32 %s297, 1
        %s1679 = scalar_lea.sflag [#allocation6], %s1678
        %s1680 = sand.u32 %s297, 1
        %s1681 = smul.addr %s1680, 8
        %s1682 = scalar_lea.vmem [#allocation21], %s1681
        %s1683 = sand.u32 %s325, 1
        %s1684 = scalar_lea.sflag [#allocation23], %s1683
        %s1685 = sand.u32 %s325, 1
        %s1686 = smul.addr %s1685, 32
        %s1687 = scalar_lea.vmem [#allocation22], %s1686
        // Predicated region
        $region105: #{tpu_custom_call.1} parent=59 // pred_check
          %p1688 = pneg %p307
        $region106: #{tpu_custom_call.1} parent=59 // pred_check_branch
          %1690 = sbr.rel (%p1688) target = $region108
        $region107: #{tpu_custom_call.1} parent=59 // pred_region
          %s1692 = ssub.s32 128, 128
          %1693 = vsyncadd %s1679, %s1692
          %s1694 = sadd.s32 %s46, %s45
          %s1695 = smul.addr %s1694, 128
          %s1696 = scalar_lea.hbm %s10, %s1695
          %s1698 = sshll.u32 %s1682, 4
          %s1699 = int_to_ptr.vmem [resolvable:$true] %s1698
          %1701 = dma.vmem_to_hbm [thread:$0]  %s1699, 128, %s1696, %s1679
        $region108: #{tpu_custom_call.1} parent=59 // pred_fallthru
          _
        // Predicated region
        $region109: #{tpu_custom_call.1} parent=59 // pred_check
          %p1702 = pneg %p335
        $region110: #{tpu_custom_call.1} parent=59 // pred_check_branch
          %1704 = sbr.rel (%p1702) target = $region112
        $region111: #{tpu_custom_call.1} parent=59 // pred_region
          %s1706 = ssub.s32 512, 512
          %1707 = vsyncadd %s1684, %s1706
          %s1708 = sadd.s32 %s46, %s45
          %s1709 = smul.addr %s1708, 128
          %s1710 = scalar_lea.hbm %s11, %s1709
          %s1711 = sshll.u32 %s1687, 4
          %s1712 = int_to_ptr.vmem [resolvable:$true] %s1711
          %1717 = dma.vmem_to_hbm [thread:$0]  %s1712, 512, %s1710, %s1684, 128, 256, 8
        $region112: #{tpu_custom_call.1} parent=59 // pred_fallthru
          _
      $region60: #{tpu_custom_call.1} parent=5 // pred_fallthru
        _
      %p1718 = scmp.le.s32.totalorder 2, %s36
      // Predicated region
      $region113: #{tpu_custom_call.1} parent=5 // pred_check
        %p1719 = pneg %p1718
      $region114: #{tpu_custom_call.1} parent=5 // pred_check_branch
        %1721 = sbr.rel (%p1719) target = $region116
      $region115: #{tpu_custom_call.1} parent=5 // pred_region
        %s1722 = ssub.s32 %s36, 2
        // Predicated region
        $region117: #{tpu_custom_call.1} parent=115 // pred_check
          %p1723 = pneg %p313
        $region118: #{tpu_custom_call.1} parent=115 // pred_check_branch
          %1725 = sbr.rel (%p1723) target = $region120
        $region119: #{tpu_custom_call.1} parent=115 // pred_region
          %s1726 = sand.u32 %s298, 1
          %s1727 = scalar_lea.sflag [#allocation6], %s1726
          %s1728 = sand.u32 %s298, 1
          %s1729 = smul.addr %s1728, 8
          %s1730 = scalar_lea.vmem [#allocation21], %s1729
          %1731 = dma.done %s1727, 128
        $region120: #{tpu_custom_call.1} parent=115 // pred_fallthru
          _
        // Predicated region
        $region121: #{tpu_custom_call.1} parent=115 // pred_check
          %p1732 = pneg %p341
        $region122: #{tpu_custom_call.1} parent=115 // pred_check_branch
          %1734 = sbr.rel (%p1732) target = $region124
        $region123: #{tpu_custom_call.1} parent=115 // pred_region
          %s1735 = sand.u32 %s326, 1
          %s1736 = scalar_lea.sflag [#allocation23], %s1735
          %s1737 = sand.u32 %s326, 1
          %s1738 = smul.addr %s1737, 32
          %s1739 = scalar_lea.vmem [#allocation22], %s1738
          %1740 = dma.done %s1736, 512
        $region124: #{tpu_custom_call.1} parent=115 // pred_fallthru
          _
      $region116: #{tpu_custom_call.1} parent=5 // pred_fallthru
        _
    $region6: #{tpu_custom_call.1} parent=1 // loop_footer
      %s40 = sadd.s32 1, %s36
    $region7: #{tpu_custom_call.1} parent=1 // loop_footer_branch
      %35 = sbr.rel target = $region3
    $region8: #{tpu_custom_call.1} parent=1 // loop_exit
      _
    %1741 = vsyncpa [#allocation5], 1
    %s1742 = scalar_lea.sflag [#allocation5], 1
    %1743 = vsyncpa %s1742, 1
    %1744 = vsyncpa [#allocation8], 1
    %s1745 = scalar_lea.sflag [#allocation8], 1
    %1746 = vsyncpa %s1745, 1
    %1747 = vsyncpa [#allocation11], 1
    %s1748 = scalar_lea.sflag [#allocation11], 1
    %1749 = vsyncpa %s1748, 1
    %1750 = vsyncpa [#allocation14], 1
    %1751 = vsyncpa [#allocation17], 1
    %1752 = vsyncpa [#allocation20], 1
    %1753 = vsyncpa [#allocation6], 1
    %s1754 = scalar_lea.sflag [#allocation6], 1
    %1755 = vsyncpa %s1754, 1
    %1756 = vsyncpa [#allocation23], 1
    %s1757 = scalar_lea.sflag [#allocation23], 1
    %1758 = vsyncpa %s1757, 1

</llo_original>
